<compile_context>
chip_gen: v7x
topology: tpu7x:2x2x1
jax: 0.10.0
libtpu: 0.0.40
codegen_flags: <defaults>
</compile_context>

<pallas_src>
import functools

import jax
import jax.numpy as jnp
from jax.experimental import pallas as pl
from jax.experimental.pallas import tpu as pltpu


def _layernorm(x, gamma, beta, eps=1e-5):
    mu = jnp.mean(x, axis=-1, keepdims=True)
    xc = x - mu
    var = jnp.mean(xc * xc, axis=-1, keepdims=True)
    return xc * jax.lax.rsqrt(var + eps) * gamma + beta


def encoder_layer_kernel(
    x_full_ref,   # (S, H)   full sequence  -> K/V source
    x_q_ref,      # (TQ, H)  query block    -> Q source + residual
    wq_ref, bq_ref, wk_ref, bk_ref, wv_ref, bv_ref, wo_ref, bo_ref,
    g1_ref, be1_ref,
    w0_ref, b0_ref, w1_ref, b1_ref,
    g2_ref, be2_ref,
    o_ref,        # (TQ, H)
    *, n_heads, head_dim, compute_dtype,
):
    cd = compute_dtype
    x_full = x_full_ref[...]          # f32 (S, H)
    x_q = x_q_ref[...]                # f32 (TQ, H)
    S = x_full.shape[0]
    TQ = x_q.shape[0]
    H = n_heads * head_dim

    xf_c = x_full.astype(cd)
    xq_c = x_q.astype(cd)

    # --- MultiHeadAttentionLayer: Q/K/V projections (weights pre-transposed,
    # y = x @ W + b).  1/sqrt(head_dim) folded into Q.
    scale = 1.0 / (float(head_dim) ** 0.5)
    q = (jnp.dot(xq_c, wq_ref[...], preferred_element_type=jnp.float32)
         + bq_ref[...]) * scale                                       # (TQ, H)
    k = jnp.dot(xf_c, wk_ref[...], preferred_element_type=jnp.float32) + bk_ref[...]  # (S, H)
    v = jnp.dot(xf_c, wv_ref[...], preferred_element_type=jnp.float32) + bv_ref[...]  # (S, H)

    # --- head-batched scaled dot-product attention (single batched einsum per
    # matmul; no per-head loop, no lane slicing/concat, no explicit transpose
    # of K inside the contraction).
    # TODO(synk): mask=None path only (module default); padding-mask support omitted.
    qh = q.reshape(TQ, n_heads, head_dim).transpose(1, 0, 2).astype(cd)  # (nh, TQ, d)
    kh = k.reshape(S, n_heads, head_dim).transpose(1, 0, 2).astype(cd)   # (nh, S, d)
    vh = v.reshape(S, n_heads, head_dim).transpose(1, 0, 2).astype(cd)   # (nh, S, d)

    energy = jnp.einsum("hqd,hkd->hqk", qh, kh,
                        preferred_element_type=jnp.float32)              # (nh, TQ, S)
    m = jnp.max(energy, axis=-1, keepdims=True)
    p = jnp.exp(energy - m)
    denom = jnp.sum(p, axis=-1, keepdims=True)
    attn = p * pl.reciprocal(denom, approx=True)                         # softmax (EUP recip)
    ctx = jnp.einsum("hqk,hkd->hqd", attn.astype(cd), vh,
                     preferred_element_type=jnp.float32)                 # (nh, TQ, d)
    ctx = ctx.transpose(1, 0, 2).reshape(TQ, H)                          # merge heads

    attn_out = jnp.dot(ctx.astype(cd), wo_ref[...],
                       preferred_element_type=jnp.float32) + bo_ref[...]

    # --- residual + LayerNorm 1 (f32 elementwise)
    x1 = _layernorm(x_q + attn_out, g1_ref[...], be1_ref[...])

    # --- PositionwiseFeedforwardLayer
    h0 = jnp.dot(x1.astype(cd), w0_ref[...],
                 preferred_element_type=jnp.float32) + b0_ref[...]
    h0 = jnp.maximum(h0, 0.0)
    ff = jnp.dot(h0.astype(cd), w1_ref[...],
                 preferred_element_type=jnp.float32) + b1_ref[...]

    # --- residual + LayerNorm 2
    out = _layernorm(x1 + ff, g2_ref[...], be2_ref[...])
    o_ref[...] = out.astype(o_ref.dtype)


def encoder_layer(x, params, *, n_heads, block_q=None, compute_dtype=jnp.float32):
    B, S, H = x.shape
    assert H % n_heads == 0
    head_dim = H // n_heads
    pf_dim = params["w0"].shape[1]
    if block_q is None:
        block_q = S                      # whole-sequence query block by default
    assert S % block_q == 0
    n_q_blocks = S // block_q

    cd = jnp.dtype(compute_dtype)
    # Matmul weights in compute dtype (halves weight DMA/VMEM in bf16 mode);
    # biases and layernorm params stay f32 (applied after f32 accumulation).
    wcast = lambda name: params[name].astype(cd)
    f32p = lambda name: params[name].astype(jnp.float32)
    weight_args = [
        wcast("wq"), f32p("bq"), wcast("wk"), f32p("bk"),
        wcast("wv"), f32p("bv"), wcast("wo"), f32p("bo"),
        f32p("g1"), f32p("be1"),
        wcast("w0"), f32p("b0"), wcast("w1"), f32p("b1"),
        f32p("g2"), f32p("be2"),
    ]
    weight_specs = [pl.BlockSpec(tuple(w.shape), lambda b, qi: (0, 0))
                    for w in weight_args]

    in_specs = [
        # full sequence (for K/V) — same array passed twice with two views
        pl.BlockSpec((pl.Squeezed(), S, H), lambda b, qi: (b, 0, 0)),
        # query block (Q source + residual)
        pl.BlockSpec((pl.Squeezed(), block_q, H), lambda b, qi: (b, qi, 0)),
    ] + weight_specs
    out_spec = pl.BlockSpec((pl.Squeezed(), block_q, H), lambda b, qi: (b, qi, 0))

    # Explicit VMEM budget: weights + double-buffered tiles + intermediates,
    # with headroom; clamped to a sane range (>=32 MiB, <=100 MiB).
    w_bytes = (4 * H * H + 2 * H * pf_dim) * cd.itemsize
    small_bytes = (9 * H + pf_dim) * 4
    act_bytes = 4 * (
        2 * (S * H + block_q * H)            # double-buffered x tiles
        + 2 * block_q * H                    # double-buffered out tile
        + block_q * H + 2 * S * H            # q, k, v
        + 2 * n_heads * block_q * S          # energy + attn
        + 4 * block_q * H                    # ctx, attn_out, x1, ff
        + block_q * pf_dim                   # h0
    )
    vmem_limit = int(1.5 * (w_bytes + small_bytes + act_bytes)) + (8 << 20)
    vmem_limit = max(32 << 20, min(vmem_limit, 100 << 20))

    kernel = functools.partial(
        encoder_layer_kernel,
        n_heads=n_heads, head_dim=head_dim, compute_dtype=cd,
    )
    return pl.pallas_call(
        kernel,
        out_shape=jax.ShapeDtypeStruct((B, S, H), x.dtype),
        grid_spec=pltpu.PrefetchScalarGridSpec(
            num_scalar_prefetch=0,
            grid=(B, n_q_blocks),
            in_specs=in_specs,
            out_specs=out_spec,
        ),
        compiler_params=pltpu.CompilerParams(
            dimension_semantics=("parallel", "parallel"),
            vmem_limit_bytes=vmem_limit,
        ),
    )(x, x, *weight_args)


def _reference(x, p, n_heads):
    B, S, H = x.shape
    hd = H // n_heads

    def ln(v, g, b, eps=1e-5):
        mu = jnp.mean(v, -1, keepdims=True)
        var = jnp.mean((v - mu) ** 2, -1, keepdims=True)
        return (v - mu) / jnp.sqrt(var + eps) * g + b

    q = x @ p["wq"] + p["bq"]
    k = x @ p["wk"] + p["bk"]
    v = x @ p["wv"] + p["bv"]
    split = lambda t: t.reshape(B, S, n_heads, hd).transpose(0, 2, 1, 3)
    qh, kh, vh = split(q), split(k), split(v)
    energy = jnp.einsum("bhqd,bhkd->bhqk", qh, kh) / jnp.sqrt(float(hd))
    attn = jax.nn.softmax(energy, axis=-1)
    ctx = jnp.einsum("bhqk,bhkd->bhqd", attn, vh).transpose(0, 2, 1, 3).reshape(B, S, H)
    attn_out = ctx @ p["wo"] + p["bo"]
    x1 = ln(x + attn_out, p["g1"], p["be1"])
    ff = jnp.maximum(x1 @ p["w0"] + p["b0"], 0.0) @ p["w1"] + p["b1"]
    return ln(x1 + ff, p["g2"], p["be2"])


if __name__ == "__main__":
    B, S, H = 2, 16, 32
    n_heads, pf_dim = 4, 64

    key = jax.random.PRNGKey(0)
    keys = jax.random.split(key, 8)
    params = {
        # nn.Linear weights stored pre-transposed: y = x @ W + b
        "wq": 0.05 * jax.random.normal(keys[0], (H, H), jnp.float32),
        "bq": jnp.zeros((1, H), jnp.float32),
        "wk": 0.05 * jax.random.normal(keys[1], (H, H), jnp.float32),
        "bk": jnp.zeros((1, H), jnp.float32),
        "wv": 0.05 * jax.random.normal(keys[2], (H, H), jnp.float32),
        "bv": jnp.zeros((1, H), jnp.float32),
        "wo": 0.05 * jax.random.normal(keys[3], (H, H), jnp.float32),
        "bo": 0.01 * jnp.ones((1, H), jnp.float32),
        "g1": jnp.ones((1, H), jnp.float32),
        "be1": jnp.zeros((1, H), jnp.float32),
        "w0": 0.05 * jax.random.normal(keys[4], (H, pf_dim), jnp.float32),
        "b0": 0.01 * jnp.ones((1, pf_dim), jnp.float32),
        "w1": 0.05 * jax.random.normal(keys[5], (pf_dim, H), jnp.float32),
        "b1": 0.01 * jnp.ones((1, H), jnp.float32),
        "g2": jnp.ones((1, H), jnp.float32),
        "be2": jnp.zeros((1, H), jnp.float32),
    }

    x = jax.random.normal(keys[6], (B, S, H), jnp.float32)
    ref = _reference(x, params, n_heads)

    # f32 path, query dimension tiled (exercises the (B, q-blocks) grid).
    out_f32 = jax.block_until_ready(
        encoder_layer(x, params, n_heads=n_heads, block_q=8,
                      compute_dtype=jnp.float32))
    assert out_f32.shape == (B, S, H)
    assert jnp.allclose(out_f32, ref, atol=3e-3, rtol=3e-3), "f32 mismatch vs reference"

    # bf16 matmul path (f32 accumulation; softmax/layernorm stay f32).
    out_bf16 = jax.block_until_ready(
        encoder_layer(x, params, n_heads=n_heads, compute_dtype=jnp.bfloat16))
    assert jnp.allclose(out_bf16, ref, atol=4e-2, rtol=4e-2), "bf16 mismatch vs reference"

    print("KERNEL_OK")
</pallas_src>

<mosaic_0001>
module attributes {stable_mosaic.version = 11 : i64} {
  func.func @encoder_layer_kernel(%arg0: i32, %arg1: i32, %arg2: memref<1x16x32xf32, #tpu.memory_space<vmem>>, %arg3: memref<1x8x32xf32, #tpu.memory_space<vmem>>, %arg4: memref<32x32xf32, #tpu.memory_space<vmem>>, %arg5: memref<1x32xf32, #tpu.memory_space<vmem>>, %arg6: memref<32x32xf32, #tpu.memory_space<vmem>>, %arg7: memref<1x32xf32, #tpu.memory_space<vmem>>, %arg8: memref<32x32xf32, #tpu.memory_space<vmem>>, %arg9: memref<1x32xf32, #tpu.memory_space<vmem>>, %arg10: memref<32x32xf32, #tpu.memory_space<vmem>>, %arg11: memref<1x32xf32, #tpu.memory_space<vmem>>, %arg12: memref<1x32xf32, #tpu.memory_space<vmem>>, %arg13: memref<1x32xf32, #tpu.memory_space<vmem>>, %arg14: memref<32x64xf32, #tpu.memory_space<vmem>>, %arg15: memref<1x64xf32, #tpu.memory_space<vmem>>, %arg16: memref<64x32xf32, #tpu.memory_space<vmem>>, %arg17: memref<1x32xf32, #tpu.memory_space<vmem>>, %arg18: memref<1x32xf32, #tpu.memory_space<vmem>>, %arg19: memref<1x32xf32, #tpu.memory_space<vmem>>, %arg20: memref<1x8x32xf32, #tpu.memory_space<vmem>>) attributes {dimension_semantics = [#tpu.dimension_semantics<parallel>, #tpu.dimension_semantics<parallel>], iteration_bounds = array<i64: 2, 2>, scalar_prefetch = 0 : i64, scratch_operands = 0 : i64, tpu.core_type = #tpu.core_type<tc>, window_params = [{transform_indices = @transform_0, window_bounds = array<i64: 1, 16, 32>}, {transform_indices = @transform_1, window_bounds = array<i64: 1, 8, 32>}, {pipeline_mode = #tpu.pipeline_mode<synchronous>, transform_indices = @transform_2, window_bounds = array<i64: 32, 32>}, {pipeline_mode = #tpu.pipeline_mode<synchronous>, transform_indices = @transform_3, window_bounds = array<i64: 1, 32>}, {pipeline_mode = #tpu.pipeline_mode<synchronous>, transform_indices = @transform_4, window_bounds = array<i64: 32, 32>}, {pipeline_mode = #tpu.pipeline_mode<synchronous>, transform_indices = @transform_5, window_bounds = array<i64: 1, 32>}, {pipeline_mode = #tpu.pipeline_mode<synchronous>, transform_indices = @transform_6, window_bounds = array<i64: 32, 32>}, {pipeline_mode = #tpu.pipeline_mode<synchronous>, transform_indices = @transform_7, window_bounds = array<i64: 1, 32>}, {pipeline_mode = #tpu.pipeline_mode<synchronous>, transform_indices = @transform_8, window_bounds = array<i64: 32, 32>}, {pipeline_mode = #tpu.pipeline_mode<synchronous>, transform_indices = @transform_9, window_bounds = array<i64: 1, 32>}, {pipeline_mode = #tpu.pipeline_mode<synchronous>, transform_indices = @transform_10, window_bounds = array<i64: 1, 32>}, {pipeline_mode = #tpu.pipeline_mode<synchronous>, transform_indices = @transform_11, window_bounds = array<i64: 1, 32>}, {pipeline_mode = #tpu.pipeline_mode<synchronous>, transform_indices = @transform_12, window_bounds = array<i64: 32, 64>}, {pipeline_mode = #tpu.pipeline_mode<synchronous>, transform_indices = @transform_13, window_bounds = array<i64: 1, 64>}, {pipeline_mode = #tpu.pipeline_mode<synchronous>, transform_indices = @transform_14, window_bounds = array<i64: 64, 32>}, {pipeline_mode = #tpu.pipeline_mode<synchronous>, transform_indices = @transform_15, window_bounds = array<i64: 1, 32>}, {pipeline_mode = #tpu.pipeline_mode<synchronous>, transform_indices = @transform_16, window_bounds = array<i64: 1, 32>}, {pipeline_mode = #tpu.pipeline_mode<synchronous>, transform_indices = @transform_17, window_bounds = array<i64: 1, 32>}, {transform_indices = @transform_18, window_bounds = array<i64: 1, 8, 32>}]} {
    %c0 = arith.constant 0 : index
    %c0_0 = arith.constant 0 : index
    %c0_1 = arith.constant 0 : index
    %0 = vector.load %arg2[%c0, %c0_0, %c0_1] : memref<1x16x32xf32, #tpu.memory_space<vmem>>, vector<1x16x32xf32>
    %1 = vector.shape_cast %0 : vector<1x16x32xf32> to vector<16x32xf32>
    %c0_2 = arith.constant 0 : index
    %c0_3 = arith.constant 0 : index
    %c0_4 = arith.constant 0 : index
    %2 = vector.load %arg3[%c0_2, %c0_3, %c0_4] : memref<1x8x32xf32, #tpu.memory_space<vmem>>, vector<1x8x32xf32>
    %3 = vector.shape_cast %2 : vector<1x8x32xf32> to vector<8x32xf32>
    %c0_5 = arith.constant 0 : index
    %c0_6 = arith.constant 0 : index
    %4 = vector.load %arg4[%c0_5, %c0_6] : memref<32x32xf32, #tpu.memory_space<vmem>>, vector<32x32xf32>
    %cst = arith.constant dense<0.000000e+00> : vector<8x32xf32>
    %5 = tpu.matmul %3, %4, %cst {dimension_numbers = #tpu.dot_dimension_numbers<[1], [0], [0], [1], [0, 0, 1, 1], [], []>} : vector<8x32xf32>, vector<32x32xf32>, vector<8x32xf32> -> vector<8x32xf32>
    %c0_7 = arith.constant 0 : index
    %c0_8 = arith.constant 0 : index
    %6 = vector.load %arg5[%c0_7, %c0_8] : memref<1x32xf32, #tpu.memory_space<vmem>>, vector<1x32xf32>
    %7 = vector.broadcast %6 : vector<1x32xf32> to vector<8x32xf32>
    %8 = arith.addf %5, %7 : vector<8x32xf32>
    %cst_9 = arith.constant 0.353553385 : f32
    %9 = vector.broadcast %cst_9 : f32 to vector<8x32xf32>
    %10 = arith.mulf %8, %9 : vector<8x32xf32>
    %c0_10 = arith.constant 0 : index
    %c0_11 = arith.constant 0 : index
    %11 = vector.load %arg6[%c0_10, %c0_11] : memref<32x32xf32, #tpu.memory_space<vmem>>, vector<32x32xf32>
    %cst_12 = arith.constant dense<0.000000e+00> : vector<16x32xf32>
    %12 = tpu.matmul %1, %11, %cst_12 {dimension_numbers = #tpu.dot_dimension_numbers<[1], [0], [0], [1], [0, 0, 1, 1], [], []>} : vector<16x32xf32>, vector<32x32xf32>, vector<16x32xf32> -> vector<16x32xf32>
    %c0_13 = arith.constant 0 : index
    %c0_14 = arith.constant 0 : index
    %13 = vector.load %arg7[%c0_13, %c0_14] : memref<1x32xf32, #tpu.memory_space<vmem>>, vector<1x32xf32>
    %14 = vector.broadcast %13 : vector<1x32xf32> to vector<16x32xf32>
    %15 = arith.addf %12, %14 : vector<16x32xf32>
    %c0_15 = arith.constant 0 : index
    %c0_16 = arith.constant 0 : index
    %16 = vector.load %arg8[%c0_15, %c0_16] : memref<32x32xf32, #tpu.memory_space<vmem>>, vector<32x32xf32>
    %cst_17 = arith.constant dense<0.000000e+00> : vector<16x32xf32>
    %17 = tpu.matmul %1, %16, %cst_17 {dimension_numbers = #tpu.dot_dimension_numbers<[1], [0], [0], [1], [0, 0, 1, 1], [], []>} : vector<16x32xf32>, vector<32x32xf32>, vector<16x32xf32> -> vector<16x32xf32>
    %c0_18 = arith.constant 0 : index
    %c0_19 = arith.constant 0 : index
    %18 = vector.load %arg9[%c0_18, %c0_19] : memref<1x32xf32, #tpu.memory_space<vmem>>, vector<1x32xf32>
    %19 = vector.broadcast %18 : vector<1x32xf32> to vector<16x32xf32>
    %20 = arith.addf %17, %19 : vector<16x32xf32>
    %21 = vector.shape_cast %10 : vector<8x32xf32> to vector<8x4x8xf32>
    %22 = tpu.transpose %21, [1, 0, 2] : vector<8x4x8xf32> -> vector<4x8x8xf32>
    %23 = vector.shape_cast %15 : vector<16x32xf32> to vector<16x4x8xf32>
    %24 = tpu.transpose %23, [1, 0, 2] : vector<16x4x8xf32> -> vector<4x16x8xf32>
    %25 = vector.shape_cast %20 : vector<16x32xf32> to vector<16x4x8xf32>
    %26 = tpu.transpose %25, [1, 0, 2] : vector<16x4x8xf32> -> vector<4x16x8xf32>
    "tpu.trace_start"() <{level = 10 : i32, message = "hqd,hkd->hqk"}> : () -> ()
    %cst_20 = arith.constant dense<0.000000e+00> : vector<4x8x16xf32>
    %27 = tpu.matmul %22, %24, %cst_20 {dimension_numbers = #tpu.dot_dimension_numbers<[2], [2], [1], [1], [0, 0, 0, 1, 1, 1], [0], [0]>} : vector<4x8x8xf32>, vector<4x16x8xf32>, vector<4x8x16xf32> -> vector<4x8x16xf32>
    "tpu.trace_stop"() : () -> ()
    %cst_21 = arith.constant dense<0xFF800000> : vector<4x8xf32>
    %28 = vector.multi_reduction <maximumf>, %27, %cst_21 [2] : vector<4x8x16xf32> to vector<4x8xf32>
    %29 = vector.shape_cast %28 : vector<4x8xf32> to vector<4x8x1xf32>
    %30 = vector.broadcast %29 : vector<4x8x1xf32> to vector<4x8x16xf32>
    %31 = arith.subf %27, %30 : vector<4x8x16xf32>
    %32 = math.exp %31 : vector<4x8x16xf32>
    %cst_22 = arith.constant dense<0.000000e+00> : vector<4x8xf32>
    %33 = vector.multi_reduction <add>, %32, %cst_22 [2] : vector<4x8x16xf32> to vector<4x8xf32>
    %34 = vector.shape_cast %33 : vector<4x8xf32> to vector<4x8x1xf32>
    %35 = tpu.reciprocal %34 {approx = true} : vector<4x8x1xf32> -> vector<4x8x1xf32>
    %36 = vector.broadcast %35 : vector<4x8x1xf32> to vector<4x8x16xf32>
    %37 = arith.mulf %32, %36 : vector<4x8x16xf32>
    "tpu.trace_start"() <{level = 10 : i32, message = "hqk,hkd->hqd"}> : () -> ()
    %cst_23 = arith.constant dense<0.000000e+00> : vector<4x8x8xf32>
    %38 = tpu.matmul %37, %26, %cst_23 {dimension_numbers = #tpu.dot_dimension_numbers<[2], [1], [1], [2], [0, 0, 0, 1, 1, 2], [0], [0]>} : vector<4x8x16xf32>, vector<4x16x8xf32>, vector<4x8x8xf32> -> vector<4x8x8xf32>
    "tpu.trace_stop"() : () -> ()
    %39 = tpu.transpose %38, [1, 0, 2] : vector<4x8x8xf32> -> vector<8x4x8xf32>
    %40 = vector.shape_cast %39 : vector<8x4x8xf32> to vector<8x32xf32>
    %c0_24 = arith.constant 0 : index
    %c0_25 = arith.constant 0 : index
    %41 = vector.load %arg10[%c0_24, %c0_25] : memref<32x32xf32, #tpu.memory_space<vmem>>, vector<32x32xf32>
    %cst_26 = arith.constant dense<0.000000e+00> : vector<8x32xf32>
    %42 = tpu.matmul %40, %41, %cst_26 {dimension_numbers = #tpu.dot_dimension_numbers<[1], [0], [0], [1], [0, 0, 1, 1], [], []>} : vector<8x32xf32>, vector<32x32xf32>, vector<8x32xf32> -> vector<8x32xf32>
    %c0_27 = arith.constant 0 : index
    %c0_28 = arith.constant 0 : index
    %43 = vector.load %arg11[%c0_27, %c0_28] : memref<1x32xf32, #tpu.memory_space<vmem>>, vector<1x32xf32>
    %44 = vector.broadcast %43 : vector<1x32xf32> to vector<8x32xf32>
    %45 = arith.addf %42, %44 : vector<8x32xf32>
    %46 = arith.addf %3, %45 : vector<8x32xf32>
    %c0_29 = arith.constant 0 : index
    %c0_30 = arith.constant 0 : index
    %47 = vector.load %arg12[%c0_29, %c0_30] : memref<1x32xf32, #tpu.memory_space<vmem>>, vector<1x32xf32>
    %c0_31 = arith.constant 0 : index
    %c0_32 = arith.constant 0 : index
    %48 = vector.load %arg13[%c0_31, %c0_32] : memref<1x32xf32, #tpu.memory_space<vmem>>, vector<1x32xf32>
    %cst_33 = arith.constant dense<0.000000e+00> : vector<8xf32>
    %49 = vector.multi_reduction <add>, %46, %cst_33 [1] : vector<8x32xf32> to vector<8xf32>
    %50 = vector.shape_cast %49 : vector<8xf32> to vector<8x1xf32>
    %cst_34 = arith.constant 3.200000e+01 : f32
    %51 = vector.broadcast %cst_34 : f32 to vector<8x1xf32>
    %52 = arith.divf %50, %51 : vector<8x1xf32>
    %53 = vector.broadcast %52 : vector<8x1xf32> to vector<8x32xf32>
    %54 = arith.subf %46, %53 : vector<8x32xf32>
    %55 = arith.mulf %54, %54 : vector<8x32xf32>
    %cst_35 = arith.constant dense<0.000000e+00> : vector<8xf32>
    %56 = vector.multi_reduction <add>, %55, %cst_35 [1] : vector<8x32xf32> to vector<8xf32>
    %57 = vector.shape_cast %56 : vector<8xf32> to vector<8x1xf32>
    %cst_36 = arith.constant 3.200000e+01 : f32
    %58 = vector.broadcast %cst_36 : f32 to vector<8x1xf32>
    %59 = arith.divf %57, %58 : vector<8x1xf32>
    %cst_37 = arith.constant 9.99999974E-6 : f32
    %60 = vector.broadcast %cst_37 : f32 to vector<8x1xf32>
    %61 = arith.addf %59, %60 : vector<8x1xf32>
    %62 = math.rsqrt %61 : vector<8x1xf32>
    %63 = vector.broadcast %62 : vector<8x1xf32> to vector<8x32xf32>
    %64 = arith.mulf %54, %63 : vector<8x32xf32>
    %65 = vector.broadcast %47 : vector<1x32xf32> to vector<8x32xf32>
    %66 = arith.mulf %64, %65 : vector<8x32xf32>
    %67 = vector.broadcast %48 : vector<1x32xf32> to vector<8x32xf32>
    %68 = arith.addf %66, %67 : vector<8x32xf32>
    %c0_38 = arith.constant 0 : index
    %c0_39 = arith.constant 0 : index
    %69 = vector.load %arg14[%c0_38, %c0_39] : memref<32x64xf32, #tpu.memory_space<vmem>>, vector<32x64xf32>
    %cst_40 = arith.constant dense<0.000000e+00> : vector<8x64xf32>
    %70 = tpu.matmul %68, %69, %cst_40 {dimension_numbers = #tpu.dot_dimension_numbers<[1], [0], [0], [1], [0, 0, 1, 1], [], []>} : vector<8x32xf32>, vector<32x64xf32>, vector<8x64xf32> -> vector<8x64xf32>
    %c0_41 = arith.constant 0 : index
    %c0_42 = arith.constant 0 : index
    %71 = vector.load %arg15[%c0_41, %c0_42] : memref<1x64xf32, #tpu.memory_space<vmem>>, vector<1x64xf32>
    %72 = vector.broadcast %71 : vector<1x64xf32> to vector<8x64xf32>
    %73 = arith.addf %70, %72 : vector<8x64xf32>
    %cst_43 = arith.constant 0.000000e+00 : f32
    %74 = vector.broadcast %cst_43 : f32 to vector<8x64xf32>
    %75 = arith.maximumf %73, %74 : vector<8x64xf32>
    %c0_44 = arith.constant 0 : index
    %c0_45 = arith.constant 0 : index
    %76 = vector.load %arg16[%c0_44, %c0_45] : memref<64x32xf32, #tpu.memory_space<vmem>>, vector<64x32xf32>
    %cst_46 = arith.constant dense<0.000000e+00> : vector<8x32xf32>
    %77 = tpu.matmul %75, %76, %cst_46 {dimension_numbers = #tpu.dot_dimension_numbers<[1], [0], [0], [1], [0, 0, 1, 1], [], []>} : vector<8x64xf32>, vector<64x32xf32>, vector<8x32xf32> -> vector<8x32xf32>
    %c0_47 = arith.constant 0 : index
    %c0_48 = arith.constant 0 : index
    %78 = vector.load %arg17[%c0_47, %c0_48] : memref<1x32xf32, #tpu.memory_space<vmem>>, vector<1x32xf32>
    %79 = vector.broadcast %78 : vector<1x32xf32> to vector<8x32xf32>
    %80 = arith.addf %77, %79 : vector<8x32xf32>
    %81 = arith.addf %68, %80 : vector<8x32xf32>
    %c0_49 = arith.constant 0 : index
    %c0_50 = arith.constant 0 : index
    %82 = vector.load %arg18[%c0_49, %c0_50] : memref<1x32xf32, #tpu.memory_space<vmem>>, vector<1x32xf32>
    %c0_51 = arith.constant 0 : index
    %c0_52 = arith.constant 0 : index
    %83 = vector.load %arg19[%c0_51, %c0_52] : memref<1x32xf32, #tpu.memory_space<vmem>>, vector<1x32xf32>
    %cst_53 = arith.constant dense<0.000000e+00> : vector<8xf32>
    %84 = vector.multi_reduction <add>, %81, %cst_53 [1] : vector<8x32xf32> to vector<8xf32>
    %85 = vector.shape_cast %84 : vector<8xf32> to vector<8x1xf32>
    %cst_54 = arith.constant 3.200000e+01 : f32
    %86 = vector.broadcast %cst_54 : f32 to vector<8x1xf32>
    %87 = arith.divf %85, %86 : vector<8x1xf32>
    %88 = vector.broadcast %87 : vector<8x1xf32> to vector<8x32xf32>
    %89 = arith.subf %81, %88 : vector<8x32xf32>
    %90 = arith.mulf %89, %89 : vector<8x32xf32>
    %cst_55 = arith.constant dense<0.000000e+00> : vector<8xf32>
    %91 = vector.multi_reduction <add>, %90, %cst_55 [1] : vector<8x32xf32> to vector<8xf32>
    %92 = vector.shape_cast %91 : vector<8xf32> to vector<8x1xf32>
    %cst_56 = arith.constant 3.200000e+01 : f32
    %93 = vector.broadcast %cst_56 : f32 to vector<8x1xf32>
    %94 = arith.divf %92, %93 : vector<8x1xf32>
    %cst_57 = arith.constant 9.99999974E-6 : f32
    %95 = vector.broadcast %cst_57 : f32 to vector<8x1xf32>
    %96 = arith.addf %94, %95 : vector<8x1xf32>
    %97 = math.rsqrt %96 : vector<8x1xf32>
    %98 = vector.broadcast %97 : vector<8x1xf32> to vector<8x32xf32>
    %99 = arith.mulf %89, %98 : vector<8x32xf32>
    %100 = vector.broadcast %82 : vector<1x32xf32> to vector<8x32xf32>
    %101 = arith.mulf %99, %100 : vector<8x32xf32>
    %102 = vector.broadcast %83 : vector<1x32xf32> to vector<8x32xf32>
    %103 = arith.addf %101, %102 : vector<8x32xf32>
    %c0_58 = arith.constant 0 : index
    %c0_59 = arith.constant 0 : index
    %c0_60 = arith.constant 0 : index
    %104 = vector.load %arg20[%c0_58, %c0_59, %c0_60] : memref<1x8x32xf32, #tpu.memory_space<vmem>>, vector<1x8x32xf32>
    %105 = vector.shape_cast %104 : vector<1x8x32xf32> to vector<8x32xf32>
    %106 = vector.shape_cast %103 : vector<8x32xf32> to vector<1x8x32xf32>
    tpu.vector_store %arg20[%c0_58, %c0_59, %c0_60], %106 {strides = array<i32>} : memref<1x8x32xf32, #tpu.memory_space<vmem>>, vector<1x8x32xf32>,
    return
  }
  func.func @transform_0(%arg0: i32, %arg1: i32) -> (i32, i32, i32) {
    %c0_i32 = arith.constant 0 : i32
    %c0_i32_0 = arith.constant 0 : i32
    %c0_i32_1 = arith.constant 0 : i32
    return %arg0, %c0_i32, %c0_i32_0 : i32, i32, i32
  }
  func.func @transform_1(%arg0: i32, %arg1: i32) -> (i32, i32, i32) {
    %c0_i32 = arith.constant 0 : i32
    %c0_i32_0 = arith.constant 0 : i32
    return %arg0, %arg1, %c0_i32 : i32, i32, i32
  }
  func.func @transform_2(%arg0: i32, %arg1: i32) -> (i32, i32) {
    %c0_i32 = arith.constant 0 : i32
    %c0_i32_0 = arith.constant 0 : i32
    %c0_i32_1 = arith.constant 0 : i32
    return %c0_i32, %c0_i32_0 : i32, i32
  }
  func.func @transform_3(%arg0: i32, %arg1: i32) -> (i32, i32) {
    %c0_i32 = arith.constant 0 : i32
    %c0_i32_0 = arith.constant 0 : i32
    %c0_i32_1 = arith.constant 0 : i32
    return %c0_i32, %c0_i32_0 : i32, i32
  }
  func.func @transform_4(%arg0: i32, %arg1: i32) -> (i32, i32) {
    %c0_i32 = arith.constant 0 : i32
    %c0_i32_0 = arith.constant 0 : i32
    %c0_i32_1 = arith.constant 0 : i32
    return %c0_i32, %c0_i32_0 : i32, i32
  }
  func.func @transform_5(%arg0: i32, %arg1: i32) -> (i32, i32) {
    %c0_i32 = arith.constant 0 : i32
    %c0_i32_0 = arith.constant 0 : i32
    %c0_i32_1 = arith.constant 0 : i32
    return %c0_i32, %c0_i32_0 : i32, i32
  }
  func.func @transform_6(%arg0: i32, %arg1: i32) -> (i32, i32) {
    %c0_i32 = arith.constant 0 : i32
    %c0_i32_0 = arith.constant 0 : i32
    %c0_i32_1 = arith.constant 0 : i32
    return %c0_i32, %c0_i32_0 : i32, i32
  }
  func.func @transform_7(%arg0: i32, %arg1: i32) -> (i32, i32) {
    %c0_i32 = arith.constant 0 : i32
    %c0_i32_0 = arith.constant 0 : i32
    %c0_i32_1 = arith.constant 0 : i32
    return %c0_i32, %c0_i32_0 : i32, i32
  }
  func.func @transform_8(%arg0: i32, %arg1: i32) -> (i32, i32) {
    %c0_i32 = arith.constant 0 : i32
    %c0_i32_0 = arith.constant 0 : i32
    %c0_i32_1 = arith.constant 0 : i32
    return %c0_i32, %c0_i32_0 : i32, i32
  }
  func.func @transform_9(%arg0: i32, %arg1: i32) -> (i32, i32) {
    %c0_i32 = arith.constant 0 : i32
    %c0_i32_0 = arith.constant 0 : i32
    %c0_i32_1 = arith.constant 0 : i32
    return %c0_i32, %c0_i32_0 : i32, i32
  }
  func.func @transform_10(%arg0: i32, %arg1: i32) -> (i32, i32) {
    %c0_i32 = arith.constant 0 : i32
    %c0_i32_0 = arith.constant 0 : i32
    %c0_i32_1 = arith.constant 0 : i32
    return %c0_i32, %c0_i32_0 : i32, i32
  }
  func.func @transform_11(%arg0: i32, %arg1: i32) -> (i32, i32) {
    %c0_i32 = arith.constant 0 : i32
    %c0_i32_0 = arith.constant 0 : i32
    %c0_i32_1 = arith.constant 0 : i32
    return %c0_i32, %c0_i32_0 : i32, i32
  }
  func.func @transform_12(%arg0: i32, %arg1: i32) -> (i32, i32) {
    %c0_i32 = arith.constant 0 : i32
    %c0_i32_0 = arith.constant 0 : i32
    %c0_i32_1 = arith.constant 0 : i32
    return %c0_i32, %c0_i32_0 : i32, i32
  }
  func.func @transform_13(%arg0: i32, %arg1: i32) -> (i32, i32) {
    %c0_i32 = arith.constant 0 : i32
    %c0_i32_0 = arith.constant 0 : i32
    %c0_i32_1 = arith.constant 0 : i32
    return %c0_i32, %c0_i32_0 : i32, i32
  }
  func.func @transform_14(%arg0: i32, %arg1: i32) -> (i32, i32) {
    %c0_i32 = arith.constant 0 : i32
    %c0_i32_0 = arith.constant 0 : i32
    %c0_i32_1 = arith.constant 0 : i32
    return %c0_i32, %c0_i32_0 : i32, i32
  }
  func.func @transform_15(%arg0: i32, %arg1: i32) -> (i32, i32) {
    %c0_i32 = arith.constant 0 : i32
    %c0_i32_0 = arith.constant 0 : i32
    %c0_i32_1 = arith.constant 0 : i32
    return %c0_i32, %c0_i32_0 : i32, i32
  }
  func.func @transform_16(%arg0: i32, %arg1: i32) -> (i32, i32) {
    %c0_i32 = arith.constant 0 : i32
    %c0_i32_0 = arith.constant 0 : i32
    %c0_i32_1 = arith.constant 0 : i32
    return %c0_i32, %c0_i32_0 : i32, i32
  }
  func.func @transform_17(%arg0: i32, %arg1: i32) -> (i32, i32) {
    %c0_i32 = arith.constant 0 : i32
    %c0_i32_0 = arith.constant 0 : i32
    %c0_i32_1 = arith.constant 0 : i32
    return %c0_i32, %c0_i32_0 : i32, i32
  }
  func.func @transform_18(%arg0: i32, %arg1: i32) -> (i32, i32, i32) {
    %c0_i32 = arith.constant 0 : i32
    %c0_i32_0 = arith.constant 0 : i32
    return %arg0, %arg1, %c0_i32 : i32, i32, i32
  }
}

</mosaic_0001>

<llo_original>
// kernel: tpu_custom_call.1
$region0: #{tpu_custom_call.1}
  #allocation0 [shape = 'u32[]', space=smem, size = 0x4, offset = 0x4, fixed_abs, tag = 'smem constant byte address 0x4 - core index']
  #allocation1 [shape = 'u32[144,128]{1,0:T(1,128)}', space=vmem, size = 0x12000, scoped, tag = 'internal scratch']
  %s0 = inlined_call_operand.vmem [shape: f32[2,16,32], index: 0, kind: input, shape index: {}]
  %s1 = inlined_call_operand.vmem [shape: f32[2,16,32], index: 1, kind: input, shape index: {}]
  %s2 = inlined_call_operand.vmem [shape: f32[32,32], index: 2, kind: input, shape index: {}]
  %s3 = inlined_call_operand.vmem [shape: f32[1,32], index: 3, kind: input, shape index: {}]
  %s4 = inlined_call_operand.hbm [shape: f32[32,32], index: 4, kind: input, shape index: {}]
  %s5 = inlined_call_operand.vmem [shape: f32[1,32], index: 5, kind: input, shape index: {}]
  %s6 = inlined_call_operand.hbm [shape: f32[32,32], index: 6, kind: input, shape index: {}]
  %s7 = inlined_call_operand.vmem [shape: f32[1,32], index: 7, kind: input, shape index: {}]
  %s8 = inlined_call_operand.hbm [shape: f32[32,32], index: 8, kind: input, shape index: {}]
  %s9 = inlined_call_operand.vmem [shape: f32[1,32], index: 9, kind: input, shape index: {}]
  %s10 = inlined_call_operand.vmem [shape: f32[1,32], index: 10, kind: input, shape index: {}]
  %s11 = inlined_call_operand.vmem [shape: f32[1,32], index: 11, kind: input, shape index: {}]
  %s12 = inlined_call_operand.hbm [shape: f32[32,64], index: 12, kind: input, shape index: {}]
  %s13 = inlined_call_operand.vmem [shape: f32[1,64], index: 13, kind: input, shape index: {}]
  %s14 = inlined_call_operand.vmem [shape: f32[64,32], index: 14, kind: input, shape index: {}]
  %s15 = inlined_call_operand.vmem [shape: f32[1,32], index: 15, kind: input, shape index: {}]
  %s16 = inlined_call_operand.vmem [shape: f32[1,32], index: 16, kind: input, shape index: {}]
  %s17 = inlined_call_operand.vmem [shape: f32[1,32], index: 17, kind: input, shape index: {}]
  %s18 = inlined_call_operand.hbm [shape: f32[2,16,32], index: 18, kind: output, shape index: {}]
  %s19 = sld [smem:[#allocation0]]
  $region121: #{tpu_custom_call.1} parent=0
    _
  %s21 = ssub.s32 1, %s19
  %s22 = scalar_select 0, %s21, %s19
  $region1: #{tpu_custom_call.1} parent=0
    #allocation2 [shape = 'u8[16384]{0}', space=vmem, size = 0x4000, scoped, tag = 'input window, operand 4, single buffered']
    #allocation3 [shape = 's32[2]{0}', space=sflag, size = 0x8, scoped, tag = 'scoped memory for tpu_custom_call.1']
    #allocation4 [shape = 's32[2]{0}', space=sflag, size = 0x8, scoped, tag = 'scoped memory for tpu_custom_call.1']
    #allocation5 [shape = 'u8[16384]{0}', space=vmem, size = 0x4000, scoped, tag = 'input window, operand 6, single buffered']
    #allocation6 [shape = 's32[1]{0}', space=sflag, size = 0x4, scoped, tag = 'scoped memory for tpu_custom_call.1']
    #allocation7 [shape = 'u8[16384]{0}', space=vmem, size = 0x4000, scoped, tag = 'input window, operand 8, single buffered']
    #allocation8 [shape = 'u8[16384]{0}', space=vmem, size = 0x4000, scoped, tag = 'input window, operand 12, single buffered']
    #allocation9 [shape = 's32[1]{0}', space=sflag, size = 0x4, scoped, tag = 'scoped memory for tpu_custom_call.1']
    #allocation10 [shape = 'u8[8192]{0}', space=vmem, size = 0x2000, scoped, tag = 'output window, operand 0']
    %23 = vsyncpa [#allocation3], 0
    %24 = vsyncpa [#allocation6], 0
    %25 = vsyncpa [#allocation9], 0
    %26 = vsyncpa [#allocation4], 0
    %s27 = scalar_lea.sflag [#allocation4], 1
    %28 = vsyncpa %s27, 0
    loop: start=0, step=1, limit=6
    $region2: #{tpu_custom_call.1} parent=1 // loop_pre_header
      _
    $region3: #{tpu_custom_call.1} parent=1 // loop_header
      %s30 = sphi 0, %s34
      %p31 = scmp.ge.s32.totalorder %s30, 6
      %s37 = sphi 0, %s49
      %s38 = sphi 0, %s45
      %s39 = sphi 0, %s37
      %s40 = sphi 0, %s38
      %s41 = sphi 0, %s39
      %s42 = sphi 0, %s40
      %s52 = sphi 0, %s54
      %s55 = sphi 0, %s52
      %s56 = sphi 0, %s55
      %s72 = sphi 0, %s56
      %s80 = sphi 0, %s82
      %s83 = sphi 0, %s80
      %s84 = sphi 0, %s83
      %s100 = sphi 0, %s84
      %s104 = sphi 0, %s104
      %s106 = sphi 0, %s104
      %s107 = sphi 0, %s106
      %s121 = sphi 0, %s107
      %s125 = sphi 0, %s125
      %s127 = sphi 0, %s125
      %s128 = sphi 0, %s127
      %s142 = sphi 0, %s128
      %s146 = sphi 0, %s146
      %s148 = sphi 0, %s146
      %s149 = sphi 0, %s148
      %s163 = sphi 0, %s149
      %s167 = sphi 0, %s167
      %s169 = sphi 0, %s167
      %s170 = sphi 0, %s169
      %s184 = sphi 0, %s170
      %s188 = sphi 0, %s188
      %s190 = sphi 0, %s188
      %s191 = sphi 0, %s190
      %s205 = sphi 0, %s191
      %s209 = sphi 0, %s209
      %s211 = sphi 0, %s209
      %s212 = sphi 0, %s211
      %s226 = sphi 0, %s212
      %s230 = sphi 0, %s230
      %s232 = sphi 0, %s230
      %s233 = sphi 0, %s232
      %s247 = sphi 0, %s233
      %s251 = sphi 0, %s251
      %s253 = sphi 0, %s251
      %s254 = sphi 0, %s253
      %s268 = sphi 0, %s254
      %s272 = sphi 0, %s272
      %s274 = sphi 0, %s272
      %s275 = sphi 0, %s274
      %s289 = sphi 0, %s275
      %s293 = sphi 0, %s293
      %s295 = sphi 0, %s293
      %s296 = sphi 0, %s295
      %s310 = sphi 0, %s296
      %s314 = sphi 0, %s314
      %s316 = sphi 0, %s314
      %s317 = sphi 0, %s316
      %s331 = sphi 0, %s317
      %s335 = sphi 0, %s335
      %s337 = sphi 0, %s335
      %s338 = sphi 0, %s337
      %s352 = sphi 0, %s338
      %s356 = sphi 0, %s356
      %s358 = sphi 0, %s356
      %s359 = sphi 0, %s358
      %s373 = sphi 0, %s359
      %s377 = sphi 0, %s377
      %s379 = sphi 0, %s377
      %s380 = sphi 0, %s379
      %s394 = sphi 0, %s380
      %s398 = sphi 0, %s398
      %s400 = sphi 0, %s398
      %s401 = sphi 0, %s400
      %s415 = sphi 0, %s401
      %s419 = sphi 0, %s419
      %s421 = sphi 0, %s419
      %s422 = sphi 0, %s421
      %s436 = sphi 0, %s422
      %s444 = sphi 0, %s446
      %s447 = sphi 0, %s444
      %s448 = sphi 0, %s447
      %s464 = sphi 0, %s448
    $region4: #{tpu_custom_call.1} parent=1 // loop_header_branch
      %33 = sbr.rel (%p31) target = $region8
    $region5: #{tpu_custom_call.1} parent=1 // loop_body
      %s35 = ssub.s32 %s30, 1
      %s36 = ssub.s32 %s30, 2
      %s43 = sadd.s32 1, %s38
      %p44 = scmp.ge.s32.totalorder %s43, 2
      %s45 = scalar_select %p44, 0, %s43
      %s46 = sadd.s32 1, %s37
      %s47 = scalar_select %p44, %s46, %s37
      %p48 = scmp.ge.s32.totalorder %s47, 2
      %s49 = scalar_select %p48, 0, %s47
      %s50 = ssub.s32 %s37, %s49
      %p51 = scmp.eq.s32.totalorder %s50, 0
      %s53 = sadd.s32 %s52, 1
      %s54 = scalar_select %p51, %s52, %s53
      %p57 = pneg %p51
      %p58 = scmp.eq.s32.totalorder %s30, 3
      %p59 = por %p57, %p58
      %p60 = scmp.ne.s32.totalorder %s52, %s55
      %p61 = scmp.eq.s32.totalorder %s30, 0
      %p62 = por %p60, %p61
      %p63 = scmp.ne.s32.totalorder %s52, %s55
      %p64 = scmp.eq.s32.totalorder %s35, 3
      %p65 = por %p63, %p64
      %p66 = scmp.ne.s32.totalorder %s55, %s56
      %p67 = scmp.eq.s32.totalorder %s35, 0
      %p68 = por %p66, %p67
      %p69 = scmp.ne.s32.totalorder %s55, %s56
      %p70 = scmp.eq.s32.totalorder %s36, 3
      %p71 = por %p69, %p70
      %p73 = scmp.ne.s32.totalorder %s56, %s72
      %p74 = scmp.eq.s32.totalorder %s36, 0
      %p75 = por %p73, %p74
      %s76 = ssub.s32 %s37, %s49
      %s77 = ssub.s32 %s38, %s45
      %s78 = sor.u32 %s76, %s77
      %p79 = scmp.eq.s32.totalorder %s78, 0
      %s81 = sadd.s32 %s80, 1
      %s82 = scalar_select %p79, %s80, %s81
      %p85 = pneg %p79
      %p86 = scmp.eq.s32.totalorder %s30, 3
      %p87 = por %p85, %p86
      %p88 = scmp.ne.s32.totalorder %s80, %s83
      %p89 = scmp.eq.s32.totalorder %s30, 0
      %p90 = por %p88, %p89
      %p91 = scmp.ne.s32.totalorder %s80, %s83
      %p92 = scmp.eq.s32.totalorder %s35, 3
      %p93 = por %p91, %p92
      %p94 = scmp.ne.s32.totalorder %s83, %s84
      %p95 = scmp.eq.s32.totalorder %s35, 0
      %p96 = por %p94, %p95
      %p97 = scmp.ne.s32.totalorder %s83, %s84
      %p98 = scmp.eq.s32.totalorder %s36, 3
      %p99 = por %p97, %p98
      %p101 = scmp.ne.s32.totalorder %s84, %s100
      %p102 = scmp.eq.s32.totalorder %s36, 0
      %p103 = por %p101, %p102
      %s105 = sadd.s32 %s104, 1
      %p108 = scmp.eq.s32.totalorder %s30, 3
      %p109 = scmp.ne.s32.totalorder %s104, %s106
      %p110 = scmp.eq.s32.totalorder %s30, 0
      %p111 = por %p109, %p110
      %p112 = scmp.ne.s32.totalorder %s104, %s106
      %p113 = scmp.eq.s32.totalorder %s35, 3
      %p114 = por %p112, %p113
      %p115 = scmp.ne.s32.totalorder %s106, %s107
      %p116 = scmp.eq.s32.totalorder %s35, 0
      %p117 = por %p115, %p116
      %p118 = scmp.ne.s32.totalorder %s106, %s107
      %p119 = scmp.eq.s32.totalorder %s36, 3
      %p120 = por %p118, %p119
      %p122 = scmp.ne.s32.totalorder %s107, %s121
      %p123 = scmp.eq.s32.totalorder %s36, 0
      %p124 = por %p122, %p123
      %s126 = sadd.s32 %s125, 1
      %p129 = scmp.eq.s32.totalorder %s30, 3
      %p130 = scmp.ne.s32.totalorder %s125, %s127
      %p131 = scmp.eq.s32.totalorder %s30, 0
      %p132 = por %p130, %p131
      %p133 = scmp.ne.s32.totalorder %s125, %s127
      %p134 = scmp.eq.s32.totalorder %s35, 3
      %p135 = por %p133, %p134
      %p136 = scmp.ne.s32.totalorder %s127, %s128
      %p137 = scmp.eq.s32.totalorder %s35, 0
      %p138 = por %p136, %p137
      %p139 = scmp.ne.s32.totalorder %s127, %s128
      %p140 = scmp.eq.s32.totalorder %s36, 3
      %p141 = por %p139, %p140
      %p143 = scmp.ne.s32.totalorder %s128, %s142
      %p144 = scmp.eq.s32.totalorder %s36, 0
      %p145 = por %p143, %p144
      %s147 = sadd.s32 %s146, 1
      %p150 = scmp.eq.s32.totalorder %s30, 3
      %p151 = scmp.ne.s32.totalorder %s146, %s148
      %p152 = scmp.eq.s32.totalorder %s30, 0
      %p153 = por %p151, %p152
      %p154 = scmp.ne.s32.totalorder %s146, %s148
      %p155 = scmp.eq.s32.totalorder %s35, 3
      %p156 = por %p154, %p155
      %p157 = scmp.ne.s32.totalorder %s148, %s149
      %p158 = scmp.eq.s32.totalorder %s35, 0
      %p159 = por %p157, %p158
      %p160 = scmp.ne.s32.totalorder %s148, %s149
      %p161 = scmp.eq.s32.totalorder %s36, 3
      %p162 = por %p160, %p161
      %p164 = scmp.ne.s32.totalorder %s149, %s163
      %p165 = scmp.eq.s32.totalorder %s36, 0
      %p166 = por %p164, %p165
      %s168 = sadd.s32 %s167, 1
      %p171 = scmp.eq.s32.totalorder %s30, 3
      %p172 = scmp.ne.s32.totalorder %s167, %s169
      %p173 = scmp.eq.s32.totalorder %s30, 0
      %p174 = por %p172, %p173
      %p175 = scmp.ne.s32.totalorder %s167, %s169
      %p176 = scmp.eq.s32.totalorder %s35, 3
      %p177 = por %p175, %p176
      %p178 = scmp.ne.s32.totalorder %s169, %s170
      %p179 = scmp.eq.s32.totalorder %s35, 0
      %p180 = por %p178, %p179
      %p181 = scmp.ne.s32.totalorder %s169, %s170
      %p182 = scmp.eq.s32.totalorder %s36, 3
      %p183 = por %p181, %p182
      %p185 = scmp.ne.s32.totalorder %s170, %s184
      %p186 = scmp.eq.s32.totalorder %s36, 0
      %p187 = por %p185, %p186
      %s189 = sadd.s32 %s188, 1
      %p192 = scmp.eq.s32.totalorder %s30, 3
      %p193 = scmp.ne.s32.totalorder %s188, %s190
      %p194 = scmp.eq.s32.totalorder %s30, 0
      %p195 = por %p193, %p194
      %p196 = scmp.ne.s32.totalorder %s188, %s190
      %p197 = scmp.eq.s32.totalorder %s35, 3
      %p198 = por %p196, %p197
      %p199 = scmp.ne.s32.totalorder %s190, %s191
      %p200 = scmp.eq.s32.totalorder %s35, 0
      %p201 = por %p199, %p200
      %p202 = scmp.ne.s32.totalorder %s190, %s191
      %p203 = scmp.eq.s32.totalorder %s36, 3
      %p204 = por %p202, %p203
      %p206 = scmp.ne.s32.totalorder %s191, %s205
      %p207 = scmp.eq.s32.totalorder %s36, 0
      %p208 = por %p206, %p207
      %s210 = sadd.s32 %s209, 1
      %p213 = scmp.eq.s32.totalorder %s30, 3
      %p214 = scmp.ne.s32.totalorder %s209, %s211
      %p215 = scmp.eq.s32.totalorder %s30, 0
      %p216 = por %p214, %p215
      %p217 = scmp.ne.s32.totalorder %s209, %s211
      %p218 = scmp.eq.s32.totalorder %s35, 3
      %p219 = por %p217, %p218
      %p220 = scmp.ne.s32.totalorder %s211, %s212
      %p221 = scmp.eq.s32.totalorder %s35, 0
      %p222 = por %p220, %p221
      %p223 = scmp.ne.s32.totalorder %s211, %s212
      %p224 = scmp.eq.s32.totalorder %s36, 3
      %p225 = por %p223, %p224
      %p227 = scmp.ne.s32.totalorder %s212, %s226
      %p228 = scmp.eq.s32.totalorder %s36, 0
      %p229 = por %p227, %p228
      %s231 = sadd.s32 %s230, 1
      %p234 = scmp.eq.s32.totalorder %s30, 3
      %p235 = scmp.ne.s32.totalorder %s230, %s232
      %p236 = scmp.eq.s32.totalorder %s30, 0
      %p237 = por %p235, %p236
      %p238 = scmp.ne.s32.totalorder %s230, %s232
      %p239 = scmp.eq.s32.totalorder %s35, 3
      %p240 = por %p238, %p239
      %p241 = scmp.ne.s32.totalorder %s232, %s233
      %p242 = scmp.eq.s32.totalorder %s35, 0
      %p243 = por %p241, %p242
      %p244 = scmp.ne.s32.totalorder %s232, %s233
      %p245 = scmp.eq.s32.totalorder %s36, 3
      %p246 = por %p244, %p245
      %p248 = scmp.ne.s32.totalorder %s233, %s247
      %p249 = scmp.eq.s32.totalorder %s36, 0
      %p250 = por %p248, %p249
      %s252 = sadd.s32 %s251, 1
      %p255 = scmp.eq.s32.totalorder %s30, 3
      %p256 = scmp.ne.s32.totalorder %s251, %s253
      %p257 = scmp.eq.s32.totalorder %s30, 0
      %p258 = por %p256, %p257
      %p259 = scmp.ne.s32.totalorder %s251, %s253
      %p260 = scmp.eq.s32.totalorder %s35, 3
      %p261 = por %p259, %p260
      %p262 = scmp.ne.s32.totalorder %s253, %s254
      %p263 = scmp.eq.s32.totalorder %s35, 0
      %p264 = por %p262, %p263
      %p265 = scmp.ne.s32.totalorder %s253, %s254
      %p266 = scmp.eq.s32.totalorder %s36, 3
      %p267 = por %p265, %p266
      %p269 = scmp.ne.s32.totalorder %s254, %s268
      %p270 = scmp.eq.s32.totalorder %s36, 0
      %p271 = por %p269, %p270
      %s273 = sadd.s32 %s272, 1
      %p276 = scmp.eq.s32.totalorder %s30, 3
      %p277 = scmp.ne.s32.totalorder %s272, %s274
      %p278 = scmp.eq.s32.totalorder %s30, 0
      %p279 = por %p277, %p278
      %p280 = scmp.ne.s32.totalorder %s272, %s274
      %p281 = scmp.eq.s32.totalorder %s35, 3
      %p282 = por %p280, %p281
      %p283 = scmp.ne.s32.totalorder %s274, %s275
      %p284 = scmp.eq.s32.totalorder %s35, 0
      %p285 = por %p283, %p284
      %p286 = scmp.ne.s32.totalorder %s274, %s275
      %p287 = scmp.eq.s32.totalorder %s36, 3
      %p288 = por %p286, %p287
      %p290 = scmp.ne.s32.totalorder %s275, %s289
      %p291 = scmp.eq.s32.totalorder %s36, 0
      %p292 = por %p290, %p291
      %s294 = sadd.s32 %s293, 1
      %p297 = scmp.eq.s32.totalorder %s30, 3
      %p298 = scmp.ne.s32.totalorder %s293, %s295
      %p299 = scmp.eq.s32.totalorder %s30, 0
      %p300 = por %p298, %p299
      %p301 = scmp.ne.s32.totalorder %s293, %s295
      %p302 = scmp.eq.s32.totalorder %s35, 3
      %p303 = por %p301, %p302
      %p304 = scmp.ne.s32.totalorder %s295, %s296
      %p305 = scmp.eq.s32.totalorder %s35, 0
      %p306 = por %p304, %p305
      %p307 = scmp.ne.s32.totalorder %s295, %s296
      %p308 = scmp.eq.s32.totalorder %s36, 3
      %p309 = por %p307, %p308
      %p311 = scmp.ne.s32.totalorder %s296, %s310
      %p312 = scmp.eq.s32.totalorder %s36, 0
      %p313 = por %p311, %p312
      %s315 = sadd.s32 %s314, 1
      %p318 = scmp.eq.s32.totalorder %s30, 3
      %p319 = scmp.ne.s32.totalorder %s314, %s316
      %p320 = scmp.eq.s32.totalorder %s30, 0
      %p321 = por %p319, %p320
      %p322 = scmp.ne.s32.totalorder %s314, %s316
      %p323 = scmp.eq.s32.totalorder %s35, 3
      %p324 = por %p322, %p323
      %p325 = scmp.ne.s32.totalorder %s316, %s317
      %p326 = scmp.eq.s32.totalorder %s35, 0
      %p327 = por %p325, %p326
      %p328 = scmp.ne.s32.totalorder %s316, %s317
      %p329 = scmp.eq.s32.totalorder %s36, 3
      %p330 = por %p328, %p329
      %p332 = scmp.ne.s32.totalorder %s317, %s331
      %p333 = scmp.eq.s32.totalorder %s36, 0
      %p334 = por %p332, %p333
      %s336 = sadd.s32 %s335, 1
      %p339 = scmp.eq.s32.totalorder %s30, 3
      %p340 = scmp.ne.s32.totalorder %s335, %s337
      %p341 = scmp.eq.s32.totalorder %s30, 0
      %p342 = por %p340, %p341
      %p343 = scmp.ne.s32.totalorder %s335, %s337
      %p344 = scmp.eq.s32.totalorder %s35, 3
      %p345 = por %p343, %p344
      %p346 = scmp.ne.s32.totalorder %s337, %s338
      %p347 = scmp.eq.s32.totalorder %s35, 0
      %p348 = por %p346, %p347
      %p349 = scmp.ne.s32.totalorder %s337, %s338
      %p350 = scmp.eq.s32.totalorder %s36, 3
      %p351 = por %p349, %p350
      %p353 = scmp.ne.s32.totalorder %s338, %s352
      %p354 = scmp.eq.s32.totalorder %s36, 0
      %p355 = por %p353, %p354
      %s357 = sadd.s32 %s356, 1
      %p360 = scmp.eq.s32.totalorder %s30, 3
      %p361 = scmp.ne.s32.totalorder %s356, %s358
      %p362 = scmp.eq.s32.totalorder %s30, 0
      %p363 = por %p361, %p362
      %p364 = scmp.ne.s32.totalorder %s356, %s358
      %p365 = scmp.eq.s32.totalorder %s35, 3
      %p366 = por %p364, %p365
      %p367 = scmp.ne.s32.totalorder %s358, %s359
      %p368 = scmp.eq.s32.totalorder %s35, 0
      %p369 = por %p367, %p368
      %p370 = scmp.ne.s32.totalorder %s358, %s359
      %p371 = scmp.eq.s32.totalorder %s36, 3
      %p372 = por %p370, %p371
      %p374 = scmp.ne.s32.totalorder %s359, %s373
      %p375 = scmp.eq.s32.totalorder %s36, 0
      %p376 = por %p374, %p375
      %s378 = sadd.s32 %s377, 1
      %p381 = scmp.eq.s32.totalorder %s30, 3
      %p382 = scmp.ne.s32.totalorder %s377, %s379
      %p383 = scmp.eq.s32.totalorder %s30, 0
      %p384 = por %p382, %p383
      %p385 = scmp.ne.s32.totalorder %s377, %s379
      %p386 = scmp.eq.s32.totalorder %s35, 3
      %p387 = por %p385, %p386
      %p388 = scmp.ne.s32.totalorder %s379, %s380
      %p389 = scmp.eq.s32.totalorder %s35, 0
      %p390 = por %p388, %p389
      %p391 = scmp.ne.s32.totalorder %s379, %s380
      %p392 = scmp.eq.s32.totalorder %s36, 3
      %p393 = por %p391, %p392
      %p395 = scmp.ne.s32.totalorder %s380, %s394
      %p396 = scmp.eq.s32.totalorder %s36, 0
      %p397 = por %p395, %p396
      %s399 = sadd.s32 %s398, 1
      %p402 = scmp.eq.s32.totalorder %s30, 3
      %p403 = scmp.ne.s32.totalorder %s398, %s400
      %p404 = scmp.eq.s32.totalorder %s30, 0
      %p405 = por %p403, %p404
      %p406 = scmp.ne.s32.totalorder %s398, %s400
      %p407 = scmp.eq.s32.totalorder %s35, 3
      %p408 = por %p406, %p407
      %p409 = scmp.ne.s32.totalorder %s400, %s401
      %p410 = scmp.eq.s32.totalorder %s35, 0
      %p411 = por %p409, %p410
      %p412 = scmp.ne.s32.totalorder %s400, %s401
      %p413 = scmp.eq.s32.totalorder %s36, 3
      %p414 = por %p412, %p413
      %p416 = scmp.ne.s32.totalorder %s401, %s415
      %p417 = scmp.eq.s32.totalorder %s36, 0
      %p418 = por %p416, %p417
      %s420 = sadd.s32 %s419, 1
      %p423 = scmp.eq.s32.totalorder %s30, 3
      %p424 = scmp.ne.s32.totalorder %s419, %s421
      %p425 = scmp.eq.s32.totalorder %s30, 0
      %p426 = por %p424, %p425
      %p427 = scmp.ne.s32.totalorder %s419, %s421
      %p428 = scmp.eq.s32.totalorder %s35, 3
      %p429 = por %p427, %p428
      %p430 = scmp.ne.s32.totalorder %s421, %s422
      %p431 = scmp.eq.s32.totalorder %s35, 0
      %p432 = por %p430, %p431
      %p433 = scmp.ne.s32.totalorder %s421, %s422
      %p434 = scmp.eq.s32.totalorder %s36, 3
      %p435 = por %p433, %p434
      %p437 = scmp.ne.s32.totalorder %s422, %s436
      %p438 = scmp.eq.s32.totalorder %s36, 0
      %p439 = por %p437, %p438
      %s440 = ssub.s32 %s37, %s49
      %s441 = ssub.s32 %s38, %s45
      %s442 = sor.u32 %s440, %s441
      %p443 = scmp.eq.s32.totalorder %s442, 0
      %s445 = sadd.s32 %s444, 1
      %s446 = scalar_select %p443, %s444, %s445
      %p449 = pneg %p443
      %p450 = scmp.eq.s32.totalorder %s30, 3
      %p451 = por %p449, %p450
      %p452 = scmp.ne.s32.totalorder %s444, %s447
      %p453 = scmp.eq.s32.totalorder %s30, 0
      %p454 = por %p452, %p453
      %p455 = scmp.ne.s32.totalorder %s444, %s447
      %p456 = scmp.eq.s32.totalorder %s35, 3
      %p457 = por %p455, %p456
      %p458 = scmp.ne.s32.totalorder %s447, %s448
      %p459 = scmp.eq.s32.totalorder %s35, 0
      %p460 = por %p458, %p459
      %p461 = scmp.ne.s32.totalorder %s447, %s448
      %p462 = scmp.eq.s32.totalorder %s36, 3
      %p463 = por %p461, %p462
      %p465 = scmp.ne.s32.totalorder %s448, %s464
      %p466 = scmp.eq.s32.totalorder %s36, 0
      %p467 = por %p465, %p466
      %p468 = scmp.le.s32.totalorder 1, %s30
      %p469 = scmp.lt.s32.totalorder %s30, 5
      %p470 = pnand %p468, %p469
      %p471 = pneg %p470
      // Predicated region
      $region9: #{tpu_custom_call.1} parent=5 // pred_check
        _
      $region10: #{tpu_custom_call.1} parent=5 // pred_check_branch
        %473 = sbr.rel (%p470) target = $region12
      $region11: #{tpu_custom_call.1} parent=5 // pred_region
        %s474 = ssub.s32 %s30, 1
        // Predicated region
        $region13: #{tpu_custom_call.1} parent=11 // pred_check
          %p475 = pneg %p117
        $region14: #{tpu_custom_call.1} parent=11 // pred_check_branch
          %477 = sbr.rel (%p475) target = $region16
        $region15: #{tpu_custom_call.1} parent=11 // pred_region
          _
        $region16: #{tpu_custom_call.1} parent=11 // pred_fallthru
          _
        // Predicated region
        $region17: #{tpu_custom_call.1} parent=11 // pred_check
          %p478 = pneg %p138
        $region18: #{tpu_custom_call.1} parent=11 // pred_check_branch
          %480 = sbr.rel (%p478) target = $region20
        $region19: #{tpu_custom_call.1} parent=11 // pred_region
          _
        $region20: #{tpu_custom_call.1} parent=11 // pred_fallthru
          _
        // Predicated region
        $region21: #{tpu_custom_call.1} parent=11 // pred_check
          %p481 = pneg %p159
        $region22: #{tpu_custom_call.1} parent=11 // pred_check_branch
          %483 = sbr.rel (%p481) target = $region24
        $region23: #{tpu_custom_call.1} parent=11 // pred_region
          %s485 = ssub.s32 512, 512
          %486 = vsyncadd [#allocation3], %s485
          %s487 = sshll.u32 [#allocation2], 4
          %s488 = int_to_ptr.vmem [resolvable:$true] %s487
          %493 = dma.hbm_to_vmem [thread:$0]  %s4, 512, %s488, [#allocation3], 128, 128, 8
        $region24: #{tpu_custom_call.1} parent=11 // pred_fallthru
          _
        // Predicated region
        $region25: #{tpu_custom_call.1} parent=11 // pred_check
          %p494 = pneg %p180
        $region26: #{tpu_custom_call.1} parent=11 // pred_check_branch
          %496 = sbr.rel (%p494) target = $region28
        $region27: #{tpu_custom_call.1} parent=11 // pred_region
          _
        $region28: #{tpu_custom_call.1} parent=11 // pred_fallthru
          _
        // Predicated region
        $region29: #{tpu_custom_call.1} parent=11 // pred_check
          %p497 = pneg %p201
        $region30: #{tpu_custom_call.1} parent=11 // pred_check_branch
          %499 = sbr.rel (%p497) target = $region32
        $region31: #{tpu_custom_call.1} parent=11 // pred_region
          %s501 = ssub.s32 512, 512
          %502 = vsyncadd [#allocation6], %s501
          %s503 = sshll.u32 [#allocation5], 4
          %s504 = int_to_ptr.vmem [resolvable:$true] %s503
          %509 = dma.hbm_to_vmem [thread:$0]  %s6, 512, %s504, [#allocation6], 128, 128, 8
        $region32: #{tpu_custom_call.1} parent=11 // pred_fallthru
          _
        // Predicated region
        $region33: #{tpu_custom_call.1} parent=11 // pred_check
          %p510 = pneg %p222
        $region34: #{tpu_custom_call.1} parent=11 // pred_check_branch
          %512 = sbr.rel (%p510) target = $region36
        $region35: #{tpu_custom_call.1} parent=11 // pred_region
          _
        $region36: #{tpu_custom_call.1} parent=11 // pred_fallthru
          _
        // Predicated region
        $region37: #{tpu_custom_call.1} parent=11 // pred_check
          %p513 = pneg %p243
        $region38: #{tpu_custom_call.1} parent=11 // pred_check_branch
          %515 = sbr.rel (%p513) target = $region40
        $region39: #{tpu_custom_call.1} parent=11 // pred_region
          %s517 = ssub.s32 512, 512
          %518 = vsyncadd [#allocation6], %s517
          %s519 = sshll.u32 [#allocation7], 4
          %s520 = int_to_ptr.vmem [resolvable:$true] %s519
          %525 = dma.hbm_to_vmem [thread:$0]  %s8, 512, %s520, [#allocation6], 128, 128, 8
        $region40: #{tpu_custom_call.1} parent=11 // pred_fallthru
          _
        // Predicated region
        $region41: #{tpu_custom_call.1} parent=11 // pred_check
          %p526 = pneg %p264
        $region42: #{tpu_custom_call.1} parent=11 // pred_check_branch
          %528 = sbr.rel (%p526) target = $region44
        $region43: #{tpu_custom_call.1} parent=11 // pred_region
          _
        $region44: #{tpu_custom_call.1} parent=11 // pred_fallthru
          _
        // Predicated region
        $region45: #{tpu_custom_call.1} parent=11 // pred_check
          %p529 = pneg %p285
        $region46: #{tpu_custom_call.1} parent=11 // pred_check_branch
          %531 = sbr.rel (%p529) target = $region48
        $region47: #{tpu_custom_call.1} parent=11 // pred_region
          _
        $region48: #{tpu_custom_call.1} parent=11 // pred_fallthru
          _
        // Predicated region
        $region49: #{tpu_custom_call.1} parent=11 // pred_check
          %p532 = pneg %p306
        $region50: #{tpu_custom_call.1} parent=11 // pred_check_branch
          %534 = sbr.rel (%p532) target = $region52
        $region51: #{tpu_custom_call.1} parent=11 // pred_region
          _
        $region52: #{tpu_custom_call.1} parent=11 // pred_fallthru
          _
        // Predicated region
        $region53: #{tpu_custom_call.1} parent=11 // pred_check
          %p535 = pneg %p327
        $region54: #{tpu_custom_call.1} parent=11 // pred_check_branch
          %537 = sbr.rel (%p535) target = $region56
        $region55: #{tpu_custom_call.1} parent=11 // pred_region
          %s539 = ssub.s32 512, 512
          %540 = vsyncadd [#allocation9], %s539
          %s541 = sshll.u32 [#allocation8], 4
          %s542 = int_to_ptr.vmem [resolvable:$true] %s541
          %547 = dma.hbm_to_vmem [thread:$0]  %s12, 512, %s542, [#allocation9], 128, 128, 8
        $region56: #{tpu_custom_call.1} parent=11 // pred_fallthru
          _
        // Predicated region
        $region57: #{tpu_custom_call.1} parent=11 // pred_check
          %p548 = pneg %p348
        $region58: #{tpu_custom_call.1} parent=11 // pred_check_branch
          %550 = sbr.rel (%p548) target = $region60
        $region59: #{tpu_custom_call.1} parent=11 // pred_region
          _
        $region60: #{tpu_custom_call.1} parent=11 // pred_fallthru
          _
        // Predicated region
        $region61: #{tpu_custom_call.1} parent=11 // pred_check
          %p551 = pneg %p369
        $region62: #{tpu_custom_call.1} parent=11 // pred_check_branch
          %553 = sbr.rel (%p551) target = $region64
        $region63: #{tpu_custom_call.1} parent=11 // pred_region
          _
        $region64: #{tpu_custom_call.1} parent=11 // pred_fallthru
          _
        // Predicated region
        $region65: #{tpu_custom_call.1} parent=11 // pred_check
          %p554 = pneg %p390
        $region66: #{tpu_custom_call.1} parent=11 // pred_check_branch
          %556 = sbr.rel (%p554) target = $region68
        $region67: #{tpu_custom_call.1} parent=11 // pred_region
          _
        $region68: #{tpu_custom_call.1} parent=11 // pred_fallthru
          _
        // Predicated region
        $region69: #{tpu_custom_call.1} parent=11 // pred_check
          %p557 = pneg %p411
        $region70: #{tpu_custom_call.1} parent=11 // pred_check_branch
          %559 = sbr.rel (%p557) target = $region72
        $region71: #{tpu_custom_call.1} parent=11 // pred_region
          _
        $region72: #{tpu_custom_call.1} parent=11 // pred_fallthru
          _
        // Predicated region
        $region73: #{tpu_custom_call.1} parent=11 // pred_check
          %p560 = pneg %p432
        $region74: #{tpu_custom_call.1} parent=11 // pred_check_branch
          %562 = sbr.rel (%p560) target = $region76
        $region75: #{tpu_custom_call.1} parent=11 // pred_region
          _
        $region76: #{tpu_custom_call.1} parent=11 // pred_fallthru
          _
      $region12: #{tpu_custom_call.1} parent=5 // pred_fallthru
        _
      %p563 = scmp.lt.s32.totalorder %s30, 4
      // Predicated region
      $region77: #{tpu_custom_call.1} parent=5 // pred_check
        %p564 = pneg %p563
      $region78: #{tpu_custom_call.1} parent=5 // pred_check_branch
        %566 = sbr.rel (%p564) target = $region80
      $region79: #{tpu_custom_call.1} parent=5 // pred_region
        // Predicated region
        $region81: #{tpu_custom_call.1} parent=79 // pred_check
          %p567 = pneg %p62
        $region82: #{tpu_custom_call.1} parent=79 // pred_check_branch
          %569 = sbr.rel (%p567) target = $region84
        $region83: #{tpu_custom_call.1} parent=79 // pred_region
          %p570 = scmp.lt.s32.totalorder %s37, 1
          %s571 = scalar_select %p570, %s37, 1
          %s572 = smul.addr %s571, 2
          %s573 = smul.addr %s572, 8
          %s574 = scalar_lea.vmem %s0, %s573
        $region84: #{tpu_custom_call.1} parent=79 // pred_fallthru
          _
        // Predicated region
        $region85: #{tpu_custom_call.1} parent=79 // pred_check
          %p575 = pneg %p90
        $region86: #{tpu_custom_call.1} parent=79 // pred_check_branch
          %577 = sbr.rel (%p575) target = $region88
        $region87: #{tpu_custom_call.1} parent=79 // pred_region
          %p578 = scmp.lt.s32.totalorder %s37, 1
          %s579 = scalar_select %p578, %s37, 1
          %p580 = scmp.lt.s32.totalorder %s38, 1
          %s581 = scalar_select %p580, %s38, 1
          %s582 = smul.addr %s579, 2
          %s583 = sadd.s32 %s581, %s582
          %s584 = smul.addr %s583, 8
          %s585 = scalar_lea.vmem %s1, %s584
        $region88: #{tpu_custom_call.1} parent=79 // pred_fallthru
          _
      $region80: #{tpu_custom_call.1} parent=5 // pred_fallthru
        _
      %p586 = scmp.le.s32.totalorder 1, %s30
      %p587 = scmp.lt.s32.totalorder %s30, 5
      %p588 = pnand %p586, %p587
      %p589 = pneg %p588
      // Predicated region
      $region89: #{tpu_custom_call.1} parent=5 // pred_check
        _
      $region90: #{tpu_custom_call.1} parent=5 // pred_check_branch
        %591 = sbr.rel (%p588) target = $region92
      $region91: #{tpu_custom_call.1} parent=5 // pred_region
        %s592 = ssub.s32 %s30, 1
        // Predicated region
        $region93: #{tpu_custom_call.1} parent=91 // pred_check
          %p593 = pneg %p159
        $region94: #{tpu_custom_call.1} parent=91 // pred_check_branch
          %595 = sbr.rel (%p593) target = $region96
        $region95: #{tpu_custom_call.1} parent=91 // pred_region
          %596 = dma.done [#allocation3], 512
        $region96: #{tpu_custom_call.1} parent=91 // pred_fallthru
          _
        // Predicated region
        $region97: #{tpu_custom_call.1} parent=91 // pred_check
          %p597 = pneg %p201
        $region98: #{tpu_custom_call.1} parent=91 // pred_check_branch
          %599 = sbr.rel (%p597) target = $region100
        $region99: #{tpu_custom_call.1} parent=91 // pred_region
          %600 = dma.done [#allocation6], 512
        $region100: #{tpu_custom_call.1} parent=91 // pred_fallthru
          _
        // Predicated region
        $region101: #{tpu_custom_call.1} parent=91 // pred_check
          %p601 = pneg %p243
        $region102: #{tpu_custom_call.1} parent=91 // pred_check_branch
          %603 = sbr.rel (%p601) target = $region104
        $region103: #{tpu_custom_call.1} parent=91 // pred_region
          %604 = dma.done [#allocation6], 512
        $region104: #{tpu_custom_call.1} parent=91 // pred_fallthru
          _
        // Predicated region
        $region105: #{tpu_custom_call.1} parent=91 // pred_check
          %p605 = pneg %p327
        $region106: #{tpu_custom_call.1} parent=91 // pred_check_branch
          %607 = sbr.rel (%p605) target = $region108
        $region107: #{tpu_custom_call.1} parent=91 // pred_region
          %608 = dma.done [#allocation9], 512
        $region108: #{tpu_custom_call.1} parent=91 // pred_fallthru
          _
        %p609 = scmp.lt.s32.totalorder %s39, 1
        %s610 = scalar_select %p609, %s39, 1
        %s611 = smul.addr %s610, 2
        %s612 = smul.addr %s611, 8
        %s613 = scalar_lea.vmem %s0, %s612
        %p614 = pneg %p68
        %p615 = pneg %p65
        %p616 = scmp.lt.s32.totalorder %s39, 1
        %s617 = scalar_select %p616, %s39, 1
        %p618 = scmp.lt.s32.totalorder %s40, 1
        %s619 = scalar_select %p618, %s40, 1
        %s620 = smul.addr %s617, 2
        %s621 = sadd.s32 %s619, %s620
        %s622 = smul.addr %s621, 8
        %s623 = scalar_lea.vmem %s1, %s622
        %p624 = pneg %p96
        %p625 = pneg %p93
        %p626 = pneg %p117
        %p627 = pneg %p114
        %p628 = pneg %p138
        %p629 = pneg %p135
        %p630 = pneg %p159
        %p631 = pneg %p156
        %p632 = pneg %p180
        %p633 = pneg %p177
        %p634 = pneg %p201
        %p635 = pneg %p198
        %p636 = pneg %p222
        %p637 = pneg %p219
        %p638 = pneg %p243
        %p639 = pneg %p240
        %p640 = pneg %p264
        %p641 = pneg %p261
        %p642 = pneg %p285
        %p643 = pneg %p282
        %p644 = pneg %p306
        %p645 = pneg %p303
        %p646 = pneg %p327
        %p647 = pneg %p324
        %p648 = pneg %p348
        %p649 = pneg %p345
        %p650 = pneg %p369
        %p651 = pneg %p366
        %p652 = pneg %p390
        %p653 = pneg %p387
        %p654 = pneg %p411
        %p655 = pneg %p408
        %p656 = pneg %p432
        %p657 = pneg %p429
        %p658 = pneg %p460
        %p659 = pneg %p457
        %s660 = sand.u32 %s447, 1
        %s661 = scalar_lea.sflag [#allocation4], %s660
        %s662 = sand.u32 %s447, 1
        %s663 = smul.addr %s662, 8
        %s664 = scalar_lea.vmem [#allocation10], %s663
        %p665 = scmp.lt.s32.totalorder %s39, 1
        %s666 = scalar_select %p665, %s39, 1
        %s667 = smul.addr %s666, 2
        %s668 = smul.addr %s667, 8
        %s669 = scalar_lea.vmem %s0, %s668
        %p670 = scmp.lt.s32.totalorder %s39, 1
        %s671 = scalar_select %p670, %s39, 1
        %p672 = scmp.lt.s32.totalorder %s40, 1
        %s673 = scalar_select %p672, %s40, 1
        %s674 = smul.addr %s671, 2
        %s675 = sadd.s32 %s673, %s674
        %s676 = smul.addr %s675, 8
        %s677 = scalar_lea.vmem %s1, %s676
        %v678 = vld [vmem:[%s669] sm:$0xff]
        %v679 = vld [vmem:[%s669 + $0x8] sm:$0xff]
        %v680 = vld [vmem:[%s677] sm:$0xff]
        %v681 = vld [vmem:[%s2] sm:$0xff]
        %v682 = vld [vmem:[%s2 + $0x8] sm:$0xff]
        %v683 = vld [vmem:[%s2 + $0x10] sm:$0xff]
        %v684 = vld [vmem:[%s2 + $0x18] sm:$0xff]
        %v685 = vld [vmem:[%s3] sm:$0x1]
        %v687 = vlaneseq
        %v688 = vshrl.u32 %v687, 7
        %v689 = vsub.s32 0, %v688
        %v690 = vrot.slane %v685, %v689
        %vm692 = vcmask 261120
        %v694 = vsel %vm692, %v680, 0
        %696 = vmatprep.subr.mxu0 0.0
        %697 = vmatpush1.msra.mxu0 %v681
        %698 = vmatprep.subr.mxu0 0.0
        %699 = vmatpush1.msra.mxu0 %v682
        %700 = vmatprep.subr.mxu0 0.0
        %701 = vmatpush1.msra.mxu0 %v683
        %702 = vmatprep.subr.mxu0 0.0
        %703 = vmatpush1.msra.mxu0 %v684
        %704 = vmatprep.subr.mxu0 0.0
        %705 = vmatpush1.msra.mxu0 0.0
        %706 = vmatprep.subr.mxu0 0.0
        %707 = vmatpush1.msra.mxu0 0.0
        %708 = vmatprep.subr.mxu0 0.0
        %709 = vmatpush1.msra.mxu0 0.0
        %710 = vmatprep.subr.mxu0 0.0
        %711 = vmatpush1.msra.mxu0 0.0
        %712 = vmatprep.subr.mxu0 0.0
        %713 = vmatpush1.msra.mxu0 0.0
        %714 = vmatprep.subr.mxu0 0.0
        %715 = vmatpush1.msra.mxu0 0.0
        %716 = vmatprep.subr.mxu0 0.0
        %717 = vmatpush1.msra.mxu0 0.0
        %718 = vmatprep.subr.mxu0 0.0
        %719 = vmatpush1.msra.mxu0 0.0
        %720 = vmatprep.subr.mxu0 0.0
        %721 = vmatpush1.msra.mxu0 0.0
        %722 = vmatprep.subr.mxu0 0.0
        %723 = vmatpush1.msra.mxu0 0.0
        %724 = vmatprep.subr.mxu0 0.0
        %725 = vmatpush1.msra.mxu0 0.0
        %726 = vmatprep.subr.mxu0 0.0
        %727 = vmatpush1.msra.mxu0 0.0
        %728 = vmatprep.subr.mxu0 0.0
        %729 = vmatpush1.msra.mxu0 0.0
        %730 = vmatprep.subr.mxu0 0.0
        %731 = vmatpush1.msra.mxu0 0.0
        %732 = vmatprep.subr.mxu0 0.0
        %733 = vmatpush1.msra.mxu0 0.0
        %734 = vmatprep.subr.mxu0 0.0
        %735 = vmatpush1.msra.mxu0 0.0
        %736 = vmatprep.subr.mxu0 0.0
        %737 = vmatpush1.msra.mxu0 0.0
        %738 = vmatprep.subr.mxu0 0.0
        %739 = vmatpush1.msra.mxu0 0.0
        %740 = vmatprep.subr.mxu0 0.0
        %741 = vmatpush1.msra.mxu0 0.0
        %742 = vmatprep.subr.mxu0 0.0
        %743 = vmatpush1.msra.mxu0 0.0
        %744 = vmatprep.subr.mxu0 0.0
        %745 = vmatpush1.msra.mxu0 0.0
        %746 = vmatprep.subr.mxu0 0.0
        %747 = vmatpush1.msra.mxu0 0.0
        %748 = vmatprep.subr.mxu0 0.0
        %749 = vmatpush1.msra.mxu0 0.0
        %750 = vmatprep.subr.mxu0 0.0
        %751 = vmatpush1.msra.mxu0 0.0
        %752 = vmatprep.subr.mxu0 0.0
        %753 = vmatpush1.msra.mxu0 0.0
        %754 = vmatprep.subr.mxu0 0.0
        %755 = vmatpush1.msra.mxu0 0.0
        %756 = vmatprep.subr.mxu0 0.0
        %757 = vmatpush1.msra.mxu0 0.0
        %758 = vmatprep.subr.mxu0 0.0
        %759 = vmatpush1.msra.mxu0 0.0
        %760 = vmatprep.mubr.f32.mxu0 0.0
        %761 = vmatmul.mubr.f32.gmra.mrb[0].mxu0 %v694
        %v762 = vpop.f32.mrb[0].mxu0
        %v763 = vadd.f32 %v690, %v762
        %v764 = vpop.f32.mrb[0].mxu0
        %765 = vdwg.mxu0
        %v766 = vmul.f32 %v763, 0.35355338
        %v767 = vld [vmem:[#allocation2] sm:$0xff]
        %v768 = vld [vmem:[#allocation2 + $0x8] sm:$0xff]
        %v769 = vld [vmem:[#allocation2 + $0x10] sm:$0xff]
        %v770 = vld [vmem:[#allocation2 + $0x18] sm:$0xff]
        %v771 = vld [vmem:[%s5] sm:$0x1]
        %v773 = vlaneseq
        %v774 = vshrl.u32 %v773, 7
        %v775 = vsub.s32 0, %v774
        %v776 = vrot.slane %v771, %v775
        %v779 = vsel %vm692, %v678, 0
        %v782 = vsel %vm692, %v679, 0
        %784 = vmatprep.subr.mxu0 0.0
        %785 = vmatpush1.msra.mxu0 %v767
        %786 = vmatprep.subr.mxu0 0.0
        %787 = vmatpush1.msra.mxu0 %v768
        %788 = vmatprep.subr.mxu0 0.0
        %789 = vmatpush1.msra.mxu0 %v769
        %790 = vmatprep.subr.mxu0 0.0
        %791 = vmatpush1.msra.mxu0 %v770
        %792 = vmatprep.subr.mxu0 0.0
        %793 = vmatpush1.msra.mxu0 0.0
        %794 = vmatprep.subr.mxu0 0.0
        %795 = vmatpush1.msra.mxu0 0.0
        %796 = vmatprep.subr.mxu0 0.0
        %797 = vmatpush1.msra.mxu0 0.0
        %798 = vmatprep.subr.mxu0 0.0
        %799 = vmatpush1.msra.mxu0 0.0
        %800 = vmatprep.subr.mxu0 0.0
        %801 = vmatpush1.msra.mxu0 0.0
        %802 = vmatprep.subr.mxu0 0.0
        %803 = vmatpush1.msra.mxu0 0.0
        %804 = vmatprep.subr.mxu0 0.0
        %805 = vmatpush1.msra.mxu0 0.0
        %806 = vmatprep.subr.mxu0 0.0
        %807 = vmatpush1.msra.mxu0 0.0
        %808 = vmatprep.subr.mxu0 0.0
        %809 = vmatpush1.msra.mxu0 0.0
        %810 = vmatprep.subr.mxu0 0.0
        %811 = vmatpush1.msra.mxu0 0.0
        %812 = vmatprep.subr.mxu0 0.0
        %813 = vmatpush1.msra.mxu0 0.0
        %814 = vmatprep.subr.mxu0 0.0
        %815 = vmatpush1.msra.mxu0 0.0
        %816 = vmatprep.subr.mxu0 0.0
        %817 = vmatpush1.msra.mxu0 0.0
        %818 = vmatprep.subr.mxu0 0.0
        %819 = vmatpush1.msra.mxu0 0.0
        %820 = vmatprep.subr.mxu0 0.0
        %821 = vmatpush1.msra.mxu0 0.0
        %822 = vmatprep.subr.mxu0 0.0
        %823 = vmatpush1.msra.mxu0 0.0
        %824 = vmatprep.subr.mxu0 0.0
        %825 = vmatpush1.msra.mxu0 0.0
        %826 = vmatprep.subr.mxu0 0.0
        %827 = vmatpush1.msra.mxu0 0.0
        %828 = vmatprep.subr.mxu0 0.0
        %829 = vmatpush1.msra.mxu0 0.0
        %830 = vmatprep.subr.mxu0 0.0
        %831 = vmatpush1.msra.mxu0 0.0
        %832 = vmatprep.subr.mxu0 0.0
        %833 = vmatpush1.msra.mxu0 0.0
        %834 = vmatprep.subr.mxu0 0.0
        %835 = vmatpush1.msra.mxu0 0.0
        %836 = vmatprep.subr.mxu0 0.0
        %837 = vmatpush1.msra.mxu0 0.0
        %838 = vmatprep.subr.mxu0 0.0
        %839 = vmatpush1.msra.mxu0 0.0
        %840 = vmatprep.subr.mxu0 0.0
        %841 = vmatpush1.msra.mxu0 0.0
        %842 = vmatprep.subr.mxu0 0.0
        %843 = vmatpush1.msra.mxu0 0.0
        %844 = vmatprep.subr.mxu0 0.0
        %845 = vmatpush1.msra.mxu0 0.0
        %846 = vmatprep.subr.mxu0 0.0
        %847 = vmatpush1.msra.mxu0 0.0
        %848 = vmatprep.mubr.f32.mxu0 0.0
        %849 = vmatmul.mubr.f32.gmra.mrb[0].mxu0 %v779
        %v850 = vpop.f32.mrb[0].mxu0
        %v851 = vadd.f32 %v776, %v850
        %v852 = vpop.f32.mrb[0].mxu0
        %853 = vmatprep.mubr.f32.mxu0 0.0
        %854 = vmatmul.mubr.f32.gmra.mrb[0].mxu0 %v782
        %v855 = vpop.f32.mrb[0].mxu0
        %v856 = vadd.f32 %v776, %v855
        %v857 = vpop.f32.mrb[0].mxu0
        %858 = vdwg.mxu0
        %v859 = vld [vmem:[#allocation5] sm:$0xff]
        %v860 = vld [vmem:[#allocation5 + $0x8] sm:$0xff]
        %v861 = vld [vmem:[#allocation5 + $0x10] sm:$0xff]
        %v862 = vld [vmem:[#allocation5 + $0x18] sm:$0xff]
        %v863 = vld [vmem:[%s7] sm:$0x1]
        %v865 = vlaneseq
        %v866 = vshrl.u32 %v865, 7
        %v867 = vsub.s32 0, %v866
        %v868 = vrot.slane %v863, %v867
        %870 = vmatprep.subr.mxu0 0.0
        %871 = vmatpush1.msra.mxu0 %v859
        %872 = vmatprep.subr.mxu0 0.0
        %873 = vmatpush1.msra.mxu0 %v860
        %874 = vmatprep.subr.mxu0 0.0
        %875 = vmatpush1.msra.mxu0 %v861
        %876 = vmatprep.subr.mxu0 0.0
        %877 = vmatpush1.msra.mxu0 %v862
        %878 = vmatprep.subr.mxu0 0.0
        %879 = vmatpush1.msra.mxu0 0.0
        %880 = vmatprep.subr.mxu0 0.0
        %881 = vmatpush1.msra.mxu0 0.0
        %882 = vmatprep.subr.mxu0 0.0
        %883 = vmatpush1.msra.mxu0 0.0
        %884 = vmatprep.subr.mxu0 0.0
        %885 = vmatpush1.msra.mxu0 0.0
        %886 = vmatprep.subr.mxu0 0.0
        %887 = vmatpush1.msra.mxu0 0.0
        %888 = vmatprep.subr.mxu0 0.0
        %889 = vmatpush1.msra.mxu0 0.0
        %890 = vmatprep.subr.mxu0 0.0
        %891 = vmatpush1.msra.mxu0 0.0
        %892 = vmatprep.subr.mxu0 0.0
        %893 = vmatpush1.msra.mxu0 0.0
        %894 = vmatprep.subr.mxu0 0.0
        %895 = vmatpush1.msra.mxu0 0.0
        %896 = vmatprep.subr.mxu0 0.0
        %897 = vmatpush1.msra.mxu0 0.0
        %898 = vmatprep.subr.mxu0 0.0
        %899 = vmatpush1.msra.mxu0 0.0
        %900 = vmatprep.subr.mxu0 0.0
        %901 = vmatpush1.msra.mxu0 0.0
        %902 = vmatprep.subr.mxu0 0.0
        %903 = vmatpush1.msra.mxu0 0.0
        %904 = vmatprep.subr.mxu0 0.0
        %905 = vmatpush1.msra.mxu0 0.0
        %906 = vmatprep.subr.mxu0 0.0
        %907 = vmatpush1.msra.mxu0 0.0
        %908 = vmatprep.subr.mxu0 0.0
        %909 = vmatpush1.msra.mxu0 0.0
        %910 = vmatprep.subr.mxu0 0.0
        %911 = vmatpush1.msra.mxu0 0.0
        %912 = vmatprep.subr.mxu0 0.0
        %913 = vmatpush1.msra.mxu0 0.0
        %914 = vmatprep.subr.mxu0 0.0
        %915 = vmatpush1.msra.mxu0 0.0
        %916 = vmatprep.subr.mxu0 0.0
        %917 = vmatpush1.msra.mxu0 0.0
        %918 = vmatprep.subr.mxu0 0.0
        %919 = vmatpush1.msra.mxu0 0.0
        %920 = vmatprep.subr.mxu0 0.0
        %921 = vmatpush1.msra.mxu0 0.0
        %922 = vmatprep.subr.mxu0 0.0
        %923 = vmatpush1.msra.mxu0 0.0
        %924 = vmatprep.subr.mxu0 0.0
        %925 = vmatpush1.msra.mxu0 0.0
        %926 = vmatprep.subr.mxu0 0.0
        %927 = vmatpush1.msra.mxu0 0.0
        %928 = vmatprep.subr.mxu0 0.0
        %929 = vmatpush1.msra.mxu0 0.0
        %930 = vmatprep.subr.mxu0 0.0
        %931 = vmatpush1.msra.mxu0 0.0
        %932 = vmatprep.subr.mxu0 0.0
        %933 = vmatpush1.msra.mxu0 0.0
        %934 = vmatprep.mubr.f32.mxu0 0.0
        %935 = vmatmul.mubr.f32.gmra.mrb[0].mxu0 %v779
        %v936 = vpop.f32.mrb[0].mxu0
        %v937 = vadd.f32 %v868, %v936
        %v938 = vpop.f32.mrb[0].mxu0
        %939 = vmatprep.mubr.f32.mxu0 0.0
        %940 = vmatmul.mubr.f32.gmra.mrb[0].mxu0 %v782
        %v941 = vpop.f32.mrb[0].mxu0
        %v942 = vadd.f32 %v868, %v941
        %v943 = vpop.f32.mrb[0].mxu0
        %944 = vdwg.mxu0
        %946 = vrot.lane.b32.xlu0 %v766, 120
        %v947 = vpop.permute.xlu0 %946
        %949 = vrot.lane.b32.xlu0 %v766, 112
        %v950 = vpop.permute.xlu0 %949
        %952 = vrot.lane.b32.xlu0 %v766, 104
        %v953 = vpop.permute.xlu0 %952
        %v955 = vcombine.low %v766, %v950
        %v956 = vcombine.high %v766, %v950
        %v958 = vunpack.c.l.s4 1983009808
        %v959 = vunpack.c.0.s8 %v958
        %v960 = vlaneseq
        %v961 = vshrl.u32 %v960, 7
        %v962 = vsub.s32 %v959, %v961
        %v963 = vrot.slane %v955, %v962
        %v965 = vunpack.c.l.s4 1983009808
        %v966 = vunpack.c.0.s8 %v965
        %v967 = vlaneseq
        %v968 = vshrl.u32 %v967, 7
        %v969 = vsub.s32 %v966, %v968
        %v970 = vrot.slane %v956, %v969
        %v971 = vcombine.low %v947, %v953
        %v972 = vcombine.high %v947, %v953
        %v974 = vunpack.c.l.s4 1983009808
        %v975 = vunpack.c.0.s8 %v974
        %v976 = vlaneseq
        %v977 = vshrl.u32 %v976, 7
        %v978 = vsub.s32 %v975, %v977
        %v979 = vrot.slane %v971, %v978
        %v981 = vunpack.c.l.s4 1983009808
        %v982 = vunpack.c.0.s8 %v981
        %v983 = vlaneseq
        %v984 = vshrl.u32 %v983, 7
        %v985 = vsub.s32 %v982, %v984
        %v986 = vrot.slane %v972, %v985
        %v987 = vcombine.low %v963, %v979
        %v988 = vcombine.high %v963, %v979
        %v990 = vunpack.c.l.s4 1934713408
        %v991 = vunpack.c.0.s8 %v990
        %v992 = vlaneseq
        %v993 = vshrl.u32 %v992, 7
        %v994 = vsub.s32 %v991, %v993
        %v995 = vrot.slane %v987, %v994
        %v997 = vunpack.c.l.s4 1934713408
        %v998 = vunpack.c.0.s8 %v997
        %v999 = vlaneseq
        %v1000 = vshrl.u32 %v999, 7
        %v1001 = vsub.s32 %v998, %v1000
        %v1002 = vrot.slane %v988, %v1001
        %v1003 = vcombine.low %v970, %v986
        %v1004 = vcombine.high %v970, %v986
        %v1006 = vunpack.c.l.s4 1934713408
        %v1007 = vunpack.c.0.s8 %v1006
        %v1008 = vlaneseq
        %v1009 = vshrl.u32 %v1008, 7
        %v1010 = vsub.s32 %v1007, %v1009
        %v1011 = vrot.slane %v1003, %v1010
        %v1013 = vunpack.c.l.s4 1934713408
        %v1014 = vunpack.c.0.s8 %v1013
        %v1015 = vlaneseq
        %v1016 = vshrl.u32 %v1015, 7
        %v1017 = vsub.s32 %v1014, %v1016
        %v1018 = vrot.slane %v1004, %v1017
        %v1019 = vcombine.high %v995, 0.0
        %v1020 = vcombine.high %v1002, 0.0
        %v1021 = vcombine.high %v1011, 0.0
        %v1022 = vcombine.high %v1018, 0.0
        %v1023 = vcombine.low %v995, %v1002
        %v1025 = vunpack.c.l.s4 1983009808
        %v1026 = vunpack.c.0.s8 %v1025
        %v1027 = vlaneseq
        %v1028 = vshrl.u32 %v1027, 7
        %v1029 = vsub.s32 %v1026, %v1028
        %v1030 = vrot.slane %v1023, %v1029
        %v1031 = vcombine.low %v1019, %v1020
        %v1033 = vunpack.c.l.s4 1983009808
        %v1034 = vunpack.c.0.s8 %v1033
        %v1035 = vlaneseq
        %v1036 = vshrl.u32 %v1035, 7
        %v1037 = vsub.s32 %v1034, %v1036
        %v1038 = vrot.slane %v1031, %v1037
        %v1039 = vcombine.low %v1011, %v1018
        %v1041 = vunpack.c.l.s4 1983009808
        %v1042 = vunpack.c.0.s8 %v1041
        %v1043 = vlaneseq
        %v1044 = vshrl.u32 %v1043, 7
        %v1045 = vsub.s32 %v1042, %v1044
        %v1046 = vrot.slane %v1039, %v1045
        %v1047 = vcombine.low %v1021, %v1022
        %v1049 = vunpack.c.l.s4 1983009808
        %v1050 = vunpack.c.0.s8 %v1049
        %v1051 = vlaneseq
        %v1052 = vshrl.u32 %v1051, 7
        %v1053 = vsub.s32 %v1050, %v1052
        %v1054 = vrot.slane %v1047, %v1053
        %v1055 = vcombine.low %v1030, %v1038
        %v1056 = vcombine.high %v1030, %v1038
        %v1058 = vunpack.c.l.s4 1934713408
        %v1059 = vunpack.c.0.s8 %v1058
        %v1060 = vlaneseq
        %v1061 = vshrl.u32 %v1060, 7
        %v1062 = vsub.s32 %v1059, %v1061
        %v1063 = vrot.slane %v1055, %v1062
        %v1065 = vunpack.c.l.s4 1934713408
        %v1066 = vunpack.c.0.s8 %v1065
        %v1067 = vlaneseq
        %v1068 = vshrl.u32 %v1067, 7
        %v1069 = vsub.s32 %v1066, %v1068
        %v1070 = vrot.slane %v1056, %v1069
        %v1071 = vcombine.low %v1046, %v1054
        %v1072 = vcombine.high %v1046, %v1054
        %v1074 = vunpack.c.l.s4 1934713408
        %v1075 = vunpack.c.0.s8 %v1074
        %v1076 = vlaneseq
        %v1077 = vshrl.u32 %v1076, 7
        %v1078 = vsub.s32 %v1075, %v1077
        %v1079 = vrot.slane %v1071, %v1078
        %v1081 = vunpack.c.l.s4 1934713408
        %v1082 = vunpack.c.0.s8 %v1081
        %v1083 = vlaneseq
        %v1084 = vshrl.u32 %v1083, 7
        %v1085 = vsub.s32 %v1082, %v1084
        %v1086 = vrot.slane %v1072, %v1085
        %v1087 = vcombine.low %v1063, %v1079
        %v1088 = vcombine.high %v1063, %v1079
        %v1089 = vcombine.low %v1070, %v1086
        %v1090 = vcombine.high %v1070, %v1086
        %1093 = vrot.lane.b32.xlu0 %v851, 120
        %v1094 = vpop.permute.xlu0 %1093
        %1095 = vrot.lane.b32.xlu0 %v856, 120
        %v1096 = vpop.permute.xlu0 %1095
        %1099 = vrot.lane.b32.xlu0 %v851, 112
        %v1100 = vpop.permute.xlu0 %1099
        %1101 = vrot.lane.b32.xlu0 %v856, 112
        %v1102 = vpop.permute.xlu0 %1101
        %1105 = vrot.lane.b32.xlu0 %v851, 104
        %v1106 = vpop.permute.xlu0 %1105
        %1107 = vrot.lane.b32.xlu0 %v856, 104
        %v1108 = vpop.permute.xlu0 %1107
        %v1111 = vcombine.low %v851, %v1100
        %v1112 = vcombine.high %v851, %v1100
        %v1114 = vunpack.c.l.s4 1983009808
        %v1115 = vunpack.c.0.s8 %v1114
        %v1116 = vlaneseq
        %v1117 = vshrl.u32 %v1116, 7
        %v1118 = vsub.s32 %v1115, %v1117
        %v1119 = vrot.slane %v1111, %v1118
        %v1121 = vunpack.c.l.s4 1983009808
        %v1122 = vunpack.c.0.s8 %v1121
        %v1123 = vlaneseq
        %v1124 = vshrl.u32 %v1123, 7
        %v1125 = vsub.s32 %v1122, %v1124
        %v1126 = vrot.slane %v1112, %v1125
        %v1127 = vcombine.low %v1094, %v1106
        %v1128 = vcombine.high %v1094, %v1106
        %v1130 = vunpack.c.l.s4 1983009808
        %v1131 = vunpack.c.0.s8 %v1130
        %v1132 = vlaneseq
        %v1133 = vshrl.u32 %v1132, 7
        %v1134 = vsub.s32 %v1131, %v1133
        %v1135 = vrot.slane %v1127, %v1134
        %v1137 = vunpack.c.l.s4 1983009808
        %v1138 = vunpack.c.0.s8 %v1137
        %v1139 = vlaneseq
        %v1140 = vshrl.u32 %v1139, 7
        %v1141 = vsub.s32 %v1138, %v1140
        %v1142 = vrot.slane %v1128, %v1141
        %v1143 = vcombine.low %v1119, %v1135
        %v1144 = vcombine.high %v1119, %v1135
        %v1146 = vunpack.c.l.s4 1934713408
        %v1147 = vunpack.c.0.s8 %v1146
        %v1148 = vlaneseq
        %v1149 = vshrl.u32 %v1148, 7
        %v1150 = vsub.s32 %v1147, %v1149
        %v1151 = vrot.slane %v1143, %v1150
        %v1153 = vunpack.c.l.s4 1934713408
        %v1154 = vunpack.c.0.s8 %v1153
        %v1155 = vlaneseq
        %v1156 = vshrl.u32 %v1155, 7
        %v1157 = vsub.s32 %v1154, %v1156
        %v1158 = vrot.slane %v1144, %v1157
        %v1159 = vcombine.low %v1126, %v1142
        %v1160 = vcombine.high %v1126, %v1142
        %v1162 = vunpack.c.l.s4 1934713408
        %v1163 = vunpack.c.0.s8 %v1162
        %v1164 = vlaneseq
        %v1165 = vshrl.u32 %v1164, 7
        %v1166 = vsub.s32 %v1163, %v1165
        %v1167 = vrot.slane %v1159, %v1166
        %v1169 = vunpack.c.l.s4 1934713408
        %v1170 = vunpack.c.0.s8 %v1169
        %v1171 = vlaneseq
        %v1172 = vshrl.u32 %v1171, 7
        %v1173 = vsub.s32 %v1170, %v1172
        %v1174 = vrot.slane %v1160, %v1173
        %v1175 = vcombine.high %v1151, 0.0
        %v1176 = vcombine.high %v1158, 0.0
        %v1177 = vcombine.high %v1167, 0.0
        %v1178 = vcombine.high %v1174, 0.0
        %v1179 = vcombine.low %v856, %v1102
        %v1180 = vcombine.high %v856, %v1102
        %v1182 = vunpack.c.l.s4 1983009808
        %v1183 = vunpack.c.0.s8 %v1182
        %v1184 = vlaneseq
        %v1185 = vshrl.u32 %v1184, 7
        %v1186 = vsub.s32 %v1183, %v1185
        %v1187 = vrot.slane %v1179, %v1186
        %v1189 = vunpack.c.l.s4 1983009808
        %v1190 = vunpack.c.0.s8 %v1189
        %v1191 = vlaneseq
        %v1192 = vshrl.u32 %v1191, 7
        %v1193 = vsub.s32 %v1190, %v1192
        %v1194 = vrot.slane %v1180, %v1193
        %v1195 = vcombine.low %v1096, %v1108
        %v1196 = vcombine.high %v1096, %v1108
        %v1198 = vunpack.c.l.s4 1983009808
        %v1199 = vunpack.c.0.s8 %v1198
        %v1200 = vlaneseq
        %v1201 = vshrl.u32 %v1200, 7
        %v1202 = vsub.s32 %v1199, %v1201
        %v1203 = vrot.slane %v1195, %v1202
        %v1205 = vunpack.c.l.s4 1983009808
        %v1206 = vunpack.c.0.s8 %v1205
        %v1207 = vlaneseq
        %v1208 = vshrl.u32 %v1207, 7
        %v1209 = vsub.s32 %v1206, %v1208
        %v1210 = vrot.slane %v1196, %v1209
        %v1211 = vcombine.low %v1187, %v1203
        %v1212 = vcombine.high %v1187, %v1203
        %v1214 = vunpack.c.l.s4 1934713408
        %v1215 = vunpack.c.0.s8 %v1214
        %v1216 = vlaneseq
        %v1217 = vshrl.u32 %v1216, 7
        %v1218 = vsub.s32 %v1215, %v1217
        %v1219 = vrot.slane %v1211, %v1218
        %v1221 = vunpack.c.l.s4 1934713408
        %v1222 = vunpack.c.0.s8 %v1221
        %v1223 = vlaneseq
        %v1224 = vshrl.u32 %v1223, 7
        %v1225 = vsub.s32 %v1222, %v1224
        %v1226 = vrot.slane %v1212, %v1225
        %v1227 = vcombine.low %v1194, %v1210
        %v1228 = vcombine.high %v1194, %v1210
        %v1230 = vunpack.c.l.s4 1934713408
        %v1231 = vunpack.c.0.s8 %v1230
        %v1232 = vlaneseq
        %v1233 = vshrl.u32 %v1232, 7
        %v1234 = vsub.s32 %v1231, %v1233
        %v1235 = vrot.slane %v1227, %v1234
        %v1237 = vunpack.c.l.s4 1934713408
        %v1238 = vunpack.c.0.s8 %v1237
        %v1239 = vlaneseq
        %v1240 = vshrl.u32 %v1239, 7
        %v1241 = vsub.s32 %v1238, %v1240
        %v1242 = vrot.slane %v1228, %v1241
        %v1243 = vcombine.high %v1219, 0.0
        %v1244 = vcombine.high %v1226, 0.0
        %v1245 = vcombine.high %v1235, 0.0
        %v1246 = vcombine.high %v1242, 0.0
        %v1247 = vcombine.low %v1151, %v1158
        %v1249 = vunpack.c.l.s4 1983009808
        %v1250 = vunpack.c.0.s8 %v1249
        %v1251 = vlaneseq
        %v1252 = vshrl.u32 %v1251, 7
        %v1253 = vsub.s32 %v1250, %v1252
        %v1254 = vrot.slane %v1247, %v1253
        %v1255 = vcombine.low %v1175, %v1176
        %v1257 = vunpack.c.l.s4 1983009808
        %v1258 = vunpack.c.0.s8 %v1257
        %v1259 = vlaneseq
        %v1260 = vshrl.u32 %v1259, 7
        %v1261 = vsub.s32 %v1258, %v1260
        %v1262 = vrot.slane %v1255, %v1261
        %v1263 = vcombine.low %v1167, %v1174
        %v1265 = vunpack.c.l.s4 1983009808
        %v1266 = vunpack.c.0.s8 %v1265
        %v1267 = vlaneseq
        %v1268 = vshrl.u32 %v1267, 7
        %v1269 = vsub.s32 %v1266, %v1268
        %v1270 = vrot.slane %v1263, %v1269
        %v1271 = vcombine.low %v1177, %v1178
        %v1273 = vunpack.c.l.s4 1983009808
        %v1274 = vunpack.c.0.s8 %v1273
        %v1275 = vlaneseq
        %v1276 = vshrl.u32 %v1275, 7
        %v1277 = vsub.s32 %v1274, %v1276
        %v1278 = vrot.slane %v1271, %v1277
        %v1279 = vcombine.low %v1254, %v1262
        %v1280 = vcombine.high %v1254, %v1262
        %v1282 = vunpack.c.l.s4 1934713408
        %v1283 = vunpack.c.0.s8 %v1282
        %v1284 = vlaneseq
        %v1285 = vshrl.u32 %v1284, 7
        %v1286 = vsub.s32 %v1283, %v1285
        %v1287 = vrot.slane %v1279, %v1286
        %v1289 = vunpack.c.l.s4 1934713408
        %v1290 = vunpack.c.0.s8 %v1289
        %v1291 = vlaneseq
        %v1292 = vshrl.u32 %v1291, 7
        %v1293 = vsub.s32 %v1290, %v1292
        %v1294 = vrot.slane %v1280, %v1293
        %v1295 = vcombine.low %v1270, %v1278
        %v1296 = vcombine.high %v1270, %v1278
        %v1298 = vunpack.c.l.s4 1934713408
        %v1299 = vunpack.c.0.s8 %v1298
        %v1300 = vlaneseq
        %v1301 = vshrl.u32 %v1300, 7
        %v1302 = vsub.s32 %v1299, %v1301
        %v1303 = vrot.slane %v1295, %v1302
        %v1305 = vunpack.c.l.s4 1934713408
        %v1306 = vunpack.c.0.s8 %v1305
        %v1307 = vlaneseq
        %v1308 = vshrl.u32 %v1307, 7
        %v1309 = vsub.s32 %v1306, %v1308
        %v1310 = vrot.slane %v1296, %v1309
        %v1311 = vcombine.low %v1287, %v1303
        %v1312 = vcombine.high %v1287, %v1303
        %v1313 = vcombine.low %v1294, %v1310
        %v1314 = vcombine.high %v1294, %v1310
        %v1315 = vcombine.low %v1219, %v1226
        %v1317 = vunpack.c.l.s4 1983009808
        %v1318 = vunpack.c.0.s8 %v1317
        %v1319 = vlaneseq
        %v1320 = vshrl.u32 %v1319, 7
        %v1321 = vsub.s32 %v1318, %v1320
        %v1322 = vrot.slane %v1315, %v1321
        %v1323 = vcombine.low %v1243, %v1244
        %v1325 = vunpack.c.l.s4 1983009808
        %v1326 = vunpack.c.0.s8 %v1325
        %v1327 = vlaneseq
        %v1328 = vshrl.u32 %v1327, 7
        %v1329 = vsub.s32 %v1326, %v1328
        %v1330 = vrot.slane %v1323, %v1329
        %v1331 = vcombine.low %v1235, %v1242
        %v1333 = vunpack.c.l.s4 1983009808
        %v1334 = vunpack.c.0.s8 %v1333
        %v1335 = vlaneseq
        %v1336 = vshrl.u32 %v1335, 7
        %v1337 = vsub.s32 %v1334, %v1336
        %v1338 = vrot.slane %v1331, %v1337
        %v1339 = vcombine.low %v1245, %v1246
        %v1341 = vunpack.c.l.s4 1983009808
        %v1342 = vunpack.c.0.s8 %v1341
        %v1343 = vlaneseq
        %v1344 = vshrl.u32 %v1343, 7
        %v1345 = vsub.s32 %v1342, %v1344
        %v1346 = vrot.slane %v1339, %v1345
        %v1347 = vcombine.low %v1322, %v1330
        %v1348 = vcombine.high %v1322, %v1330
        %v1350 = vunpack.c.l.s4 1934713408
        %v1351 = vunpack.c.0.s8 %v1350
        %v1352 = vlaneseq
        %v1353 = vshrl.u32 %v1352, 7
        %v1354 = vsub.s32 %v1351, %v1353
        %v1355 = vrot.slane %v1347, %v1354
        %v1357 = vunpack.c.l.s4 1934713408
        %v1358 = vunpack.c.0.s8 %v1357
        %v1359 = vlaneseq
        %v1360 = vshrl.u32 %v1359, 7
        %v1361 = vsub.s32 %v1358, %v1360
        %v1362 = vrot.slane %v1348, %v1361
        %v1363 = vcombine.low %v1338, %v1346
        %v1364 = vcombine.high %v1338, %v1346
        %v1366 = vunpack.c.l.s4 1934713408
        %v1367 = vunpack.c.0.s8 %v1366
        %v1368 = vlaneseq
        %v1369 = vshrl.u32 %v1368, 7
        %v1370 = vsub.s32 %v1367, %v1369
        %v1371 = vrot.slane %v1363, %v1370
        %v1373 = vunpack.c.l.s4 1934713408
        %v1374 = vunpack.c.0.s8 %v1373
        %v1375 = vlaneseq
        %v1376 = vshrl.u32 %v1375, 7
        %v1377 = vsub.s32 %v1374, %v1376
        %v1378 = vrot.slane %v1364, %v1377
        %v1379 = vcombine.low %v1355, %v1371
        %v1380 = vcombine.high %v1355, %v1371
        %v1381 = vcombine.low %v1362, %v1378
        %v1382 = vcombine.high %v1362, %v1378
        %1385 = vrot.lane.b32.xlu0 %v937, 120
        %v1386 = vpop.permute.xlu0 %1385
        %1387 = vrot.lane.b32.xlu0 %v942, 120
        %v1388 = vpop.permute.xlu0 %1387
        %1391 = vrot.lane.b32.xlu0 %v937, 112
        %v1392 = vpop.permute.xlu0 %1391
        %1393 = vrot.lane.b32.xlu0 %v942, 112
        %v1394 = vpop.permute.xlu0 %1393
        %1397 = vrot.lane.b32.xlu0 %v937, 104
        %v1398 = vpop.permute.xlu0 %1397
        %1399 = vrot.lane.b32.xlu0 %v942, 104
        %v1400 = vpop.permute.xlu0 %1399
        %v1403 = vcombine.low %v937, %v1392
        %v1404 = vcombine.high %v937, %v1392
        %v1406 = vunpack.c.l.s4 1983009808
        %v1407 = vunpack.c.0.s8 %v1406
        %v1408 = vlaneseq
        %v1409 = vshrl.u32 %v1408, 7
        %v1410 = vsub.s32 %v1407, %v1409
        %v1411 = vrot.slane %v1403, %v1410
        %v1413 = vunpack.c.l.s4 1983009808
        %v1414 = vunpack.c.0.s8 %v1413
        %v1415 = vlaneseq
        %v1416 = vshrl.u32 %v1415, 7
        %v1417 = vsub.s32 %v1414, %v1416
        %v1418 = vrot.slane %v1404, %v1417
        %v1419 = vcombine.low %v1386, %v1398
        %v1420 = vcombine.high %v1386, %v1398
        %v1422 = vunpack.c.l.s4 1983009808
        %v1423 = vunpack.c.0.s8 %v1422
        %v1424 = vlaneseq
        %v1425 = vshrl.u32 %v1424, 7
        %v1426 = vsub.s32 %v1423, %v1425
        %v1427 = vrot.slane %v1419, %v1426
        %v1429 = vunpack.c.l.s4 1983009808
        %v1430 = vunpack.c.0.s8 %v1429
        %v1431 = vlaneseq
        %v1432 = vshrl.u32 %v1431, 7
        %v1433 = vsub.s32 %v1430, %v1432
        %v1434 = vrot.slane %v1420, %v1433
        %v1435 = vcombine.low %v1411, %v1427
        %v1436 = vcombine.high %v1411, %v1427
        %v1438 = vunpack.c.l.s4 1934713408
        %v1439 = vunpack.c.0.s8 %v1438
        %v1440 = vlaneseq
        %v1441 = vshrl.u32 %v1440, 7
        %v1442 = vsub.s32 %v1439, %v1441
        %v1443 = vrot.slane %v1435, %v1442
        %v1445 = vunpack.c.l.s4 1934713408
        %v1446 = vunpack.c.0.s8 %v1445
        %v1447 = vlaneseq
        %v1448 = vshrl.u32 %v1447, 7
        %v1449 = vsub.s32 %v1446, %v1448
        %v1450 = vrot.slane %v1436, %v1449
        %v1451 = vcombine.low %v1418, %v1434
        %v1452 = vcombine.high %v1418, %v1434
        %v1454 = vunpack.c.l.s4 1934713408
        %v1455 = vunpack.c.0.s8 %v1454
        %v1456 = vlaneseq
        %v1457 = vshrl.u32 %v1456, 7
        %v1458 = vsub.s32 %v1455, %v1457
        %v1459 = vrot.slane %v1451, %v1458
        %v1461 = vunpack.c.l.s4 1934713408
        %v1462 = vunpack.c.0.s8 %v1461
        %v1463 = vlaneseq
        %v1464 = vshrl.u32 %v1463, 7
        %v1465 = vsub.s32 %v1462, %v1464
        %v1466 = vrot.slane %v1452, %v1465
        %v1467 = vcombine.high %v1443, 0.0
        %v1468 = vcombine.high %v1450, 0.0
        %v1469 = vcombine.high %v1459, 0.0
        %v1470 = vcombine.high %v1466, 0.0
        %v1471 = vcombine.low %v942, %v1394
        %v1472 = vcombine.high %v942, %v1394
        %v1474 = vunpack.c.l.s4 1983009808
        %v1475 = vunpack.c.0.s8 %v1474
        %v1476 = vlaneseq
        %v1477 = vshrl.u32 %v1476, 7
        %v1478 = vsub.s32 %v1475, %v1477
        %v1479 = vrot.slane %v1471, %v1478
        %v1481 = vunpack.c.l.s4 1983009808
        %v1482 = vunpack.c.0.s8 %v1481
        %v1483 = vlaneseq
        %v1484 = vshrl.u32 %v1483, 7
        %v1485 = vsub.s32 %v1482, %v1484
        %v1486 = vrot.slane %v1472, %v1485
        %v1487 = vcombine.low %v1388, %v1400
        %v1488 = vcombine.high %v1388, %v1400
        %v1490 = vunpack.c.l.s4 1983009808
        %v1491 = vunpack.c.0.s8 %v1490
        %v1492 = vlaneseq
        %v1493 = vshrl.u32 %v1492, 7
        %v1494 = vsub.s32 %v1491, %v1493
        %v1495 = vrot.slane %v1487, %v1494
        %v1497 = vunpack.c.l.s4 1983009808
        %v1498 = vunpack.c.0.s8 %v1497
        %v1499 = vlaneseq
        %v1500 = vshrl.u32 %v1499, 7
        %v1501 = vsub.s32 %v1498, %v1500
        %v1502 = vrot.slane %v1488, %v1501
        %v1503 = vcombine.low %v1479, %v1495
        %v1504 = vcombine.high %v1479, %v1495
        %v1506 = vunpack.c.l.s4 1934713408
        %v1507 = vunpack.c.0.s8 %v1506
        %v1508 = vlaneseq
        %v1509 = vshrl.u32 %v1508, 7
        %v1510 = vsub.s32 %v1507, %v1509
        %v1511 = vrot.slane %v1503, %v1510
        %v1513 = vunpack.c.l.s4 1934713408
        %v1514 = vunpack.c.0.s8 %v1513
        %v1515 = vlaneseq
        %v1516 = vshrl.u32 %v1515, 7
        %v1517 = vsub.s32 %v1514, %v1516
        %v1518 = vrot.slane %v1504, %v1517
        %v1519 = vcombine.low %v1486, %v1502
        %v1520 = vcombine.high %v1486, %v1502
        %v1522 = vunpack.c.l.s4 1934713408
        %v1523 = vunpack.c.0.s8 %v1522
        %v1524 = vlaneseq
        %v1525 = vshrl.u32 %v1524, 7
        %v1526 = vsub.s32 %v1523, %v1525
        %v1527 = vrot.slane %v1519, %v1526
        %v1529 = vunpack.c.l.s4 1934713408
        %v1530 = vunpack.c.0.s8 %v1529
        %v1531 = vlaneseq
        %v1532 = vshrl.u32 %v1531, 7
        %v1533 = vsub.s32 %v1530, %v1532
        %v1534 = vrot.slane %v1520, %v1533
        %v1535 = vcombine.high %v1511, 0.0
        %v1536 = vcombine.high %v1518, 0.0
        %v1537 = vcombine.high %v1527, 0.0
        %v1538 = vcombine.high %v1534, 0.0
        %v1539 = vcombine.low %v1443, %v1450
        %v1541 = vunpack.c.l.s4 1983009808
        %v1542 = vunpack.c.0.s8 %v1541
        %v1543 = vlaneseq
        %v1544 = vshrl.u32 %v1543, 7
        %v1545 = vsub.s32 %v1542, %v1544
        %v1546 = vrot.slane %v1539, %v1545
        %v1547 = vcombine.low %v1467, %v1468
        %v1549 = vunpack.c.l.s4 1983009808
        %v1550 = vunpack.c.0.s8 %v1549
        %v1551 = vlaneseq
        %v1552 = vshrl.u32 %v1551, 7
        %v1553 = vsub.s32 %v1550, %v1552
        %v1554 = vrot.slane %v1547, %v1553
        %v1555 = vcombine.low %v1459, %v1466
        %v1557 = vunpack.c.l.s4 1983009808
        %v1558 = vunpack.c.0.s8 %v1557
        %v1559 = vlaneseq
        %v1560 = vshrl.u32 %v1559, 7
        %v1561 = vsub.s32 %v1558, %v1560
        %v1562 = vrot.slane %v1555, %v1561
        %v1563 = vcombine.low %v1469, %v1470
        %v1565 = vunpack.c.l.s4 1983009808
        %v1566 = vunpack.c.0.s8 %v1565
        %v1567 = vlaneseq
        %v1568 = vshrl.u32 %v1567, 7
        %v1569 = vsub.s32 %v1566, %v1568
        %v1570 = vrot.slane %v1563, %v1569
        %v1571 = vcombine.low %v1546, %v1554
        %v1572 = vcombine.high %v1546, %v1554
        %v1574 = vunpack.c.l.s4 1934713408
        %v1575 = vunpack.c.0.s8 %v1574
        %v1576 = vlaneseq
        %v1577 = vshrl.u32 %v1576, 7
        %v1578 = vsub.s32 %v1575, %v1577
        %v1579 = vrot.slane %v1571, %v1578
        %v1581 = vunpack.c.l.s4 1934713408
        %v1582 = vunpack.c.0.s8 %v1581
        %v1583 = vlaneseq
        %v1584 = vshrl.u32 %v1583, 7
        %v1585 = vsub.s32 %v1582, %v1584
        %v1586 = vrot.slane %v1572, %v1585
        %v1587 = vcombine.low %v1562, %v1570
        %v1588 = vcombine.high %v1562, %v1570
        %v1590 = vunpack.c.l.s4 1934713408
        %v1591 = vunpack.c.0.s8 %v1590
        %v1592 = vlaneseq
        %v1593 = vshrl.u32 %v1592, 7
        %v1594 = vsub.s32 %v1591, %v1593
        %v1595 = vrot.slane %v1587, %v1594
        %v1597 = vunpack.c.l.s4 1934713408
        %v1598 = vunpack.c.0.s8 %v1597
        %v1599 = vlaneseq
        %v1600 = vshrl.u32 %v1599, 7
        %v1601 = vsub.s32 %v1598, %v1600
        %v1602 = vrot.slane %v1588, %v1601
        %v1603 = vcombine.low %v1579, %v1595
        %v1604 = vcombine.high %v1579, %v1595
        %v1605 = vcombine.low %v1586, %v1602
        %v1606 = vcombine.high %v1586, %v1602
        %v1607 = vcombine.low %v1511, %v1518
        %v1609 = vunpack.c.l.s4 1983009808
        %v1610 = vunpack.c.0.s8 %v1609
        %v1611 = vlaneseq
        %v1612 = vshrl.u32 %v1611, 7
        %v1613 = vsub.s32 %v1610, %v1612
        %v1614 = vrot.slane %v1607, %v1613
        %v1615 = vcombine.low %v1535, %v1536
        %v1617 = vunpack.c.l.s4 1983009808
        %v1618 = vunpack.c.0.s8 %v1617
        %v1619 = vlaneseq
        %v1620 = vshrl.u32 %v1619, 7
        %v1621 = vsub.s32 %v1618, %v1620
        %v1622 = vrot.slane %v1615, %v1621
        %v1623 = vcombine.low %v1527, %v1534
        %v1625 = vunpack.c.l.s4 1983009808
        %v1626 = vunpack.c.0.s8 %v1625
        %v1627 = vlaneseq
        %v1628 = vshrl.u32 %v1627, 7
        %v1629 = vsub.s32 %v1626, %v1628
        %v1630 = vrot.slane %v1623, %v1629
        %v1631 = vcombine.low %v1537, %v1538
        %v1633 = vunpack.c.l.s4 1983009808
        %v1634 = vunpack.c.0.s8 %v1633
        %v1635 = vlaneseq
        %v1636 = vshrl.u32 %v1635, 7
        %v1637 = vsub.s32 %v1634, %v1636
        %v1638 = vrot.slane %v1631, %v1637
        %v1639 = vcombine.low %v1614, %v1622
        %v1640 = vcombine.high %v1614, %v1622
        %v1642 = vunpack.c.l.s4 1934713408
        %v1643 = vunpack.c.0.s8 %v1642
        %v1644 = vlaneseq
        %v1645 = vshrl.u32 %v1644, 7
        %v1646 = vsub.s32 %v1643, %v1645
        %v1647 = vrot.slane %v1639, %v1646
        %v1649 = vunpack.c.l.s4 1934713408
        %v1650 = vunpack.c.0.s8 %v1649
        %v1651 = vlaneseq
        %v1652 = vshrl.u32 %v1651, 7
        %v1653 = vsub.s32 %v1650, %v1652
        %v1654 = vrot.slane %v1640, %v1653
        %v1655 = vcombine.low %v1630, %v1638
        %v1656 = vcombine.high %v1630, %v1638
        %v1658 = vunpack.c.l.s4 1934713408
        %v1659 = vunpack.c.0.s8 %v1658
        %v1660 = vlaneseq
        %v1661 = vshrl.u32 %v1660, 7
        %v1662 = vsub.s32 %v1659, %v1661
        %v1663 = vrot.slane %v1655, %v1662
        %v1665 = vunpack.c.l.s4 1934713408
        %v1666 = vunpack.c.0.s8 %v1665
        %v1667 = vlaneseq
        %v1668 = vshrl.u32 %v1667, 7
        %v1669 = vsub.s32 %v1666, %v1668
        %v1670 = vrot.slane %v1656, %v1669
        %v1671 = vcombine.low %v1647, %v1663
        %v1672 = vcombine.high %v1647, %v1663
        %v1673 = vcombine.low %v1654, %v1670
        %v1674 = vcombine.high %v1654, %v1670
        %vm1675 = vcmask 64512
        %v1677 = vsel %vm1675, %v1087, 0
        %v1680 = vsel %vm1675, %v1311, 0
        %v1683 = vsel %vm1675, %v1379, 0
        %1685 = vmatprep.subr.mxu0 0.0
        %1686 = vmatpush1.xpose.msra.mxu0 %v1680
        %1687 = vmatprep.subr.mxu0 0.0
        %1688 = vmatpush1.xpose.msra.mxu0 %v1683
        %1689 = vmatprep.subr.mxu0 0.0
        %1690 = vmatpush1.xpose.msra.mxu0 0.0
        %1691 = vmatprep.subr.mxu0 0.0
        %1692 = vmatpush1.xpose.msra.mxu0 0.0
        %1693 = vmatprep.subr.mxu0 0.0
        %1694 = vmatpush1.xpose.msra.mxu0 0.0
        %1695 = vmatprep.subr.mxu0 0.0
        %1696 = vmatpush1.xpose.msra.mxu0 0.0
        %1697 = vmatprep.subr.mxu0 0.0
        %1698 = vmatpush1.xpose.msra.mxu0 0.0
        %1699 = vmatprep.subr.mxu0 0.0
        %1700 = vmatpush1.xpose.msra.mxu0 0.0
        %1701 = vmatprep.subr.mxu0 0.0
        %1702 = vmatpush1.xpose.msra.mxu0 0.0
        %1703 = vmatprep.subr.mxu0 0.0
        %1704 = vmatpush1.xpose.msra.mxu0 0.0
        %1705 = vmatprep.subr.mxu0 0.0
        %1706 = vmatpush1.xpose.msra.mxu0 0.0
        %1707 = vmatprep.subr.mxu0 0.0
        %1708 = vmatpush1.xpose.msra.mxu0 0.0
        %1709 = vmatprep.subr.mxu0 0.0
        %1710 = vmatpush1.xpose.msra.mxu0 0.0
        %1711 = vmatprep.subr.mxu0 0.0
        %1712 = vmatpush1.xpose.msra.mxu0 0.0
        %1713 = vmatprep.subr.mxu0 0.0
        %1714 = vmatpush1.xpose.msra.mxu0 0.0
        %1715 = vmatprep.subr.mxu0 0.0
        %1716 = vmatpush1.xpose.msra.mxu0 0.0
        %1717 = vmatprep.subr.mxu0 0.0
        %1718 = vmatpush1.xpose.msra.mxu0 0.0
        %1719 = vmatprep.subr.mxu0 0.0
        %1720 = vmatpush1.xpose.msra.mxu0 0.0
        %1721 = vmatprep.subr.mxu0 0.0
        %1722 = vmatpush1.xpose.msra.mxu0 0.0
        %1723 = vmatprep.subr.mxu0 0.0
        %1724 = vmatpush1.xpose.msra.mxu0 0.0
        %1725 = vmatprep.subr.mxu0 0.0
        %1726 = vmatpush1.xpose.msra.mxu0 0.0
        %1727 = vmatprep.subr.mxu0 0.0
        %1728 = vmatpush1.xpose.msra.mxu0 0.0
        %1729 = vmatprep.subr.mxu0 0.0
        %1730 = vmatpush1.xpose.msra.mxu0 0.0
        %1731 = vmatprep.subr.mxu0 0.0
        %1732 = vmatpush1.xpose.msra.mxu0 0.0
        %1733 = vmatprep.subr.mxu0 0.0
        %1734 = vmatpush1.xpose.msra.mxu0 0.0
        %1735 = vmatprep.subr.mxu0 0.0
        %1736 = vmatpush1.xpose.msra.mxu0 0.0
        %1737 = vmatprep.subr.mxu0 0.0
        %1738 = vmatpush1.xpose.msra.mxu0 0.0
        %1739 = vmatprep.subr.mxu0 0.0
        %1740 = vmatpush1.xpose.msra.mxu0 0.0
        %1741 = vmatprep.subr.mxu0 0.0
        %1742 = vmatpush1.xpose.msra.mxu0 0.0
        %1743 = vmatprep.subr.mxu0 0.0
        %1744 = vmatpush1.xpose.msra.mxu0 0.0
        %1745 = vmatprep.subr.mxu0 0.0
        %1746 = vmatpush1.xpose.msra.mxu0 0.0
        %1747 = vmatprep.subr.mxu0 0.0
        %1748 = vmatpush1.xpose.msra.mxu0 0.0
        %1749 = vmatprep.mubr.f32.mxu0 0.0
        %1750 = vmatmul.mubr.f32.gmra.mrb[0].mxu0 %v1677
        %v1751 = vpop.f32.mrb[0].mxu0
        %v1752 = vadd.f32 0.0, %v1751
        %v1753 = vpop.f32.mrb[0].mxu0
        %1754 = vdwg.mxu0
        %v1756 = vsel %vm1675, %v1088, 0
        %v1759 = vsel %vm1675, %v1312, 0
        %v1762 = vsel %vm1675, %v1380, 0
        %1764 = vmatprep.subr.mxu0 0.0
        %1765 = vmatpush1.xpose.msra.mxu0 %v1759
        %1766 = vmatprep.subr.mxu0 0.0
        %1767 = vmatpush1.xpose.msra.mxu0 %v1762
        %1768 = vmatprep.subr.mxu0 0.0
        %1769 = vmatpush1.xpose.msra.mxu0 0.0
        %1770 = vmatprep.subr.mxu0 0.0
        %1771 = vmatpush1.xpose.msra.mxu0 0.0
        %1772 = vmatprep.subr.mxu0 0.0
        %1773 = vmatpush1.xpose.msra.mxu0 0.0
        %1774 = vmatprep.subr.mxu0 0.0
        %1775 = vmatpush1.xpose.msra.mxu0 0.0
        %1776 = vmatprep.subr.mxu0 0.0
        %1777 = vmatpush1.xpose.msra.mxu0 0.0
        %1778 = vmatprep.subr.mxu0 0.0
        %1779 = vmatpush1.xpose.msra.mxu0 0.0
        %1780 = vmatprep.subr.mxu0 0.0
        %1781 = vmatpush1.xpose.msra.mxu0 0.0
        %1782 = vmatprep.subr.mxu0 0.0
        %1783 = vmatpush1.xpose.msra.mxu0 0.0
        %1784 = vmatprep.subr.mxu0 0.0
        %1785 = vmatpush1.xpose.msra.mxu0 0.0
        %1786 = vmatprep.subr.mxu0 0.0
        %1787 = vmatpush1.xpose.msra.mxu0 0.0
        %1788 = vmatprep.subr.mxu0 0.0
        %1789 = vmatpush1.xpose.msra.mxu0 0.0
        %1790 = vmatprep.subr.mxu0 0.0
        %1791 = vmatpush1.xpose.msra.mxu0 0.0
        %1792 = vmatprep.subr.mxu0 0.0
        %1793 = vmatpush1.xpose.msra.mxu0 0.0
        %1794 = vmatprep.subr.mxu0 0.0
        %1795 = vmatpush1.xpose.msra.mxu0 0.0
        %1796 = vmatprep.subr.mxu0 0.0
        %1797 = vmatpush1.xpose.msra.mxu0 0.0
        %1798 = vmatprep.subr.mxu0 0.0
        %1799 = vmatpush1.xpose.msra.mxu0 0.0
        %1800 = vmatprep.subr.mxu0 0.0
        %1801 = vmatpush1.xpose.msra.mxu0 0.0
        %1802 = vmatprep.subr.mxu0 0.0
        %1803 = vmatpush1.xpose.msra.mxu0 0.0
        %1804 = vmatprep.subr.mxu0 0.0
        %1805 = vmatpush1.xpose.msra.mxu0 0.0
        %1806 = vmatprep.subr.mxu0 0.0
        %1807 = vmatpush1.xpose.msra.mxu0 0.0
        %1808 = vmatprep.subr.mxu0 0.0
        %1809 = vmatpush1.xpose.msra.mxu0 0.0
        %1810 = vmatprep.subr.mxu0 0.0
        %1811 = vmatpush1.xpose.msra.mxu0 0.0
        %1812 = vmatprep.subr.mxu0 0.0
        %1813 = vmatpush1.xpose.msra.mxu0 0.0
        %1814 = vmatprep.subr.mxu0 0.0
        %1815 = vmatpush1.xpose.msra.mxu0 0.0
        %1816 = vmatprep.subr.mxu0 0.0
        %1817 = vmatpush1.xpose.msra.mxu0 0.0
        %1818 = vmatprep.subr.mxu0 0.0
        %1819 = vmatpush1.xpose.msra.mxu0 0.0
        %1820 = vmatprep.subr.mxu0 0.0
        %1821 = vmatpush1.xpose.msra.mxu0 0.0
        %1822 = vmatprep.subr.mxu0 0.0
        %1823 = vmatpush1.xpose.msra.mxu0 0.0
        %1824 = vmatprep.subr.mxu0 0.0
        %1825 = vmatpush1.xpose.msra.mxu0 0.0
        %1826 = vmatprep.subr.mxu0 0.0
        %1827 = vmatpush1.xpose.msra.mxu0 0.0
        %1828 = vmatprep.mubr.f32.mxu0 0.0
        %1829 = vmatmul.mubr.f32.gmra.mrb[0].mxu0 %v1756
        %v1830 = vpop.f32.mrb[0].mxu0
        %v1831 = vadd.f32 0.0, %v1830
        %v1832 = vpop.f32.mrb[0].mxu0
        %1833 = vdwg.mxu0
        %v1835 = vsel %vm1675, %v1089, 0
        %v1838 = vsel %vm1675, %v1313, 0
        %v1841 = vsel %vm1675, %v1381, 0
        %1843 = vmatprep.subr.mxu0 0.0
        %1844 = vmatpush1.xpose.msra.mxu0 %v1838
        %1845 = vmatprep.subr.mxu0 0.0
        %1846 = vmatpush1.xpose.msra.mxu0 %v1841
        %1847 = vmatprep.subr.mxu0 0.0
        %1848 = vmatpush1.xpose.msra.mxu0 0.0
        %1849 = vmatprep.subr.mxu0 0.0
        %1850 = vmatpush1.xpose.msra.mxu0 0.0
        %1851 = vmatprep.subr.mxu0 0.0
        %1852 = vmatpush1.xpose.msra.mxu0 0.0
        %1853 = vmatprep.subr.mxu0 0.0
        %1854 = vmatpush1.xpose.msra.mxu0 0.0
        %1855 = vmatprep.subr.mxu0 0.0
        %1856 = vmatpush1.xpose.msra.mxu0 0.0
        %1857 = vmatprep.subr.mxu0 0.0
        %1858 = vmatpush1.xpose.msra.mxu0 0.0
        %1859 = vmatprep.subr.mxu0 0.0
        %1860 = vmatpush1.xpose.msra.mxu0 0.0
        %1861 = vmatprep.subr.mxu0 0.0
        %1862 = vmatpush1.xpose.msra.mxu0 0.0
        %1863 = vmatprep.subr.mxu0 0.0
        %1864 = vmatpush1.xpose.msra.mxu0 0.0
        %1865 = vmatprep.subr.mxu0 0.0
        %1866 = vmatpush1.xpose.msra.mxu0 0.0
        %1867 = vmatprep.subr.mxu0 0.0
        %1868 = vmatpush1.xpose.msra.mxu0 0.0
        %1869 = vmatprep.subr.mxu0 0.0
        %1870 = vmatpush1.xpose.msra.mxu0 0.0
        %1871 = vmatprep.subr.mxu0 0.0
        %1872 = vmatpush1.xpose.msra.mxu0 0.0
        %1873 = vmatprep.subr.mxu0 0.0
        %1874 = vmatpush1.xpose.msra.mxu0 0.0
        %1875 = vmatprep.subr.mxu0 0.0
        %1876 = vmatpush1.xpose.msra.mxu0 0.0
        %1877 = vmatprep.subr.mxu0 0.0
        %1878 = vmatpush1.xpose.msra.mxu0 0.0
        %1879 = vmatprep.subr.mxu0 0.0
        %1880 = vmatpush1.xpose.msra.mxu0 0.0
        %1881 = vmatprep.subr.mxu0 0.0
        %1882 = vmatpush1.xpose.msra.mxu0 0.0
        %1883 = vmatprep.subr.mxu0 0.0
        %1884 = vmatpush1.xpose.msra.mxu0 0.0
        %1885 = vmatprep.subr.mxu0 0.0
        %1886 = vmatpush1.xpose.msra.mxu0 0.0
        %1887 = vmatprep.subr.mxu0 0.0
        %1888 = vmatpush1.xpose.msra.mxu0 0.0
        %1889 = vmatprep.subr.mxu0 0.0
        %1890 = vmatpush1.xpose.msra.mxu0 0.0
        %1891 = vmatprep.subr.mxu0 0.0
        %1892 = vmatpush1.xpose.msra.mxu0 0.0
        %1893 = vmatprep.subr.mxu0 0.0
        %1894 = vmatpush1.xpose.msra.mxu0 0.0
        %1895 = vmatprep.subr.mxu0 0.0
        %1896 = vmatpush1.xpose.msra.mxu0 0.0
        %1897 = vmatprep.subr.mxu0 0.0
        %1898 = vmatpush1.xpose.msra.mxu0 0.0
        %1899 = vmatprep.subr.mxu0 0.0
        %1900 = vmatpush1.xpose.msra.mxu0 0.0
        %1901 = vmatprep.subr.mxu0 0.0
        %1902 = vmatpush1.xpose.msra.mxu0 0.0
        %1903 = vmatprep.subr.mxu0 0.0
        %1904 = vmatpush1.xpose.msra.mxu0 0.0
        %1905 = vmatprep.subr.mxu0 0.0
        %1906 = vmatpush1.xpose.msra.mxu0 0.0
        %1907 = vmatprep.mubr.f32.mxu0 0.0
        %1908 = vmatmul.mubr.f32.gmra.mrb[0].mxu0 %v1835
        %v1909 = vpop.f32.mrb[0].mxu0
        %v1910 = vadd.f32 0.0, %v1909
        %v1911 = vpop.f32.mrb[0].mxu0
        %1912 = vdwg.mxu0
        %v1914 = vsel %vm1675, %v1090, 0
        %v1917 = vsel %vm1675, %v1314, 0
        %v1920 = vsel %vm1675, %v1382, 0
        %1922 = vmatprep.subr.mxu0 0.0
        %1923 = vmatpush1.xpose.msra.mxu0 %v1917
        %1924 = vmatprep.subr.mxu0 0.0
        %1925 = vmatpush1.xpose.msra.mxu0 %v1920
        %1926 = vmatprep.subr.mxu0 0.0
        %1927 = vmatpush1.xpose.msra.mxu0 0.0
        %1928 = vmatprep.subr.mxu0 0.0
        %1929 = vmatpush1.xpose.msra.mxu0 0.0
        %1930 = vmatprep.subr.mxu0 0.0
        %1931 = vmatpush1.xpose.msra.mxu0 0.0
        %1932 = vmatprep.subr.mxu0 0.0
        %1933 = vmatpush1.xpose.msra.mxu0 0.0
        %1934 = vmatprep.subr.mxu0 0.0
        %1935 = vmatpush1.xpose.msra.mxu0 0.0
        %1936 = vmatprep.subr.mxu0 0.0
        %1937 = vmatpush1.xpose.msra.mxu0 0.0
        %1938 = vmatprep.subr.mxu0 0.0
        %1939 = vmatpush1.xpose.msra.mxu0 0.0
        %1940 = vmatprep.subr.mxu0 0.0
        %1941 = vmatpush1.xpose.msra.mxu0 0.0
        %1942 = vmatprep.subr.mxu0 0.0
        %1943 = vmatpush1.xpose.msra.mxu0 0.0
        %1944 = vmatprep.subr.mxu0 0.0
        %1945 = vmatpush1.xpose.msra.mxu0 0.0
        %1946 = vmatprep.subr.mxu0 0.0
        %1947 = vmatpush1.xpose.msra.mxu0 0.0
        %1948 = vmatprep.subr.mxu0 0.0
        %1949 = vmatpush1.xpose.msra.mxu0 0.0
        %1950 = vmatprep.subr.mxu0 0.0
        %1951 = vmatpush1.xpose.msra.mxu0 0.0
        %1952 = vmatprep.subr.mxu0 0.0
        %1953 = vmatpush1.xpose.msra.mxu0 0.0
        %1954 = vmatprep.subr.mxu0 0.0
        %1955 = vmatpush1.xpose.msra.mxu0 0.0
        %1956 = vmatprep.subr.mxu0 0.0
        %1957 = vmatpush1.xpose.msra.mxu0 0.0
        %1958 = vmatprep.subr.mxu0 0.0
        %1959 = vmatpush1.xpose.msra.mxu0 0.0
        %1960 = vmatprep.subr.mxu0 0.0
        %1961 = vmatpush1.xpose.msra.mxu0 0.0
        %1962 = vmatprep.subr.mxu0 0.0
        %1963 = vmatpush1.xpose.msra.mxu0 0.0
        %1964 = vmatprep.subr.mxu0 0.0
        %1965 = vmatpush1.xpose.msra.mxu0 0.0
        %1966 = vmatprep.subr.mxu0 0.0
        %1967 = vmatpush1.xpose.msra.mxu0 0.0
        %1968 = vmatprep.subr.mxu0 0.0
        %1969 = vmatpush1.xpose.msra.mxu0 0.0
        %1970 = vmatprep.subr.mxu0 0.0
        %1971 = vmatpush1.xpose.msra.mxu0 0.0
        %1972 = vmatprep.subr.mxu0 0.0
        %1973 = vmatpush1.xpose.msra.mxu0 0.0
        %1974 = vmatprep.subr.mxu0 0.0
        %1975 = vmatpush1.xpose.msra.mxu0 0.0
        %1976 = vmatprep.subr.mxu0 0.0
        %1977 = vmatpush1.xpose.msra.mxu0 0.0
        %1978 = vmatprep.subr.mxu0 0.0
        %1979 = vmatpush1.xpose.msra.mxu0 0.0
        %1980 = vmatprep.subr.mxu0 0.0
        %1981 = vmatpush1.xpose.msra.mxu0 0.0
        %1982 = vmatprep.subr.mxu0 0.0
        %1983 = vmatpush1.xpose.msra.mxu0 0.0
        %1984 = vmatprep.subr.mxu0 0.0
        %1985 = vmatpush1.xpose.msra.mxu0 0.0
        %1986 = vmatprep.mubr.f32.mxu0 0.0
        %1987 = vmatmul.mubr.f32.gmra.mrb[0].mxu0 %v1914
        %v1988 = vpop.f32.mrb[0].mxu0
        %v1989 = vadd.f32 0.0, %v1988
        %v1990 = vpop.f32.mrb[0].mxu0
        %1991 = vdwg.mxu0
        %vm1992 = vcmask 130048
        %v1993 = vsel %vm1992, %v1752, -inf
        %1994 = vmax.xlane.f32.xlu0 %v1993
        %v1995 = vpop.xlane.xlu0 %1994
        %v1996 = vsel %vm1992, %v1831, -inf
        %1997 = vmax.xlane.f32.xlu0 %v1996
        %v1998 = vpop.xlane.xlu0 %1997
        %v1999 = vsel %vm1992, %v1910, -inf
        %2000 = vmax.xlane.f32.xlu0 %v1999
        %v2001 = vpop.xlane.xlu0 %2000
        %v2002 = vsel %vm1992, %v1989, -inf
        %2003 = vmax.xlane.f32.xlu0 %v2002
        %v2004 = vpop.xlane.xlu0 %2003
        %v2005 = vsub.f32 %v1752, %v1995
        %v2006 = vsub.f32 %v1831, %v1998
        %v2007 = vsub.f32 %v1910, %v2001
        %v2008 = vsub.f32 %v1989, %v2004
        %v2009 = vmul.f32 %v2005, 1.442695
        %v2010 = vpow.pop %v2009
        %v2011 = vmul.f32 %v2006, 1.442695
        %v2012 = vpow.pop %v2011
        %v2013 = vmul.f32 %v2007, 1.442695
        %v2014 = vpow.pop %v2013
        %v2015 = vmul.f32 %v2008, 1.442695
        %v2016 = vpow.pop %v2015
        %v2017 = vsel %vm1992, %v2010, 0.0
        %2018 = vadd.xlane.f32.xlu0 %v2017
        %v2019 = vpop.xlane.xlu0 %2018
        %v2020 = vsel %vm1992, %v2012, 0.0
        %2021 = vadd.xlane.f32.xlu0 %v2020
        %v2022 = vpop.xlane.xlu0 %2021
        %v2023 = vsel %vm1992, %v2014, 0.0
        %2024 = vadd.xlane.f32.xlu0 %v2023
        %v2025 = vpop.xlane.xlu0 %2024
        %v2026 = vsel %vm1992, %v2016, 0.0
        %2027 = vadd.xlane.f32.xlu0 %v2026
        %v2028 = vpop.xlane.xlu0 %2027
        %v2029 = vrcp.pop %v2019
        %v2030 = vrcp.pop %v2022
        %v2031 = vrcp.pop %v2025
        %v2032 = vrcp.pop %v2028
        %v2033 = vmul.f32 %v2010, %v2029
        %v2034 = vmul.f32 %v2012, %v2030
        %v2035 = vmul.f32 %v2014, %v2031
        %v2036 = vmul.f32 %v2016, %v2032
        %v2038 = vsel %vm1992, %v2033, 0
        %2040 = vmatprep.subr.mxu0 0.0
        %2041 = vmatpush1.msra.mxu0 %v1603
        %2042 = vmatprep.subr.mxu0 0.0
        %2043 = vmatpush1.msra.mxu0 %v1671
        %2044 = vmatprep.subr.mxu0 0.0
        %2045 = vmatpush1.msra.mxu0 0.0
        %2046 = vmatprep.subr.mxu0 0.0
        %2047 = vmatpush1.msra.mxu0 0.0
        %2048 = vmatprep.subr.mxu0 0.0
        %2049 = vmatpush1.msra.mxu0 0.0
        %2050 = vmatprep.subr.mxu0 0.0
        %2051 = vmatpush1.msra.mxu0 0.0
        %2052 = vmatprep.subr.mxu0 0.0
        %2053 = vmatpush1.msra.mxu0 0.0
        %2054 = vmatprep.subr.mxu0 0.0
        %2055 = vmatpush1.msra.mxu0 0.0
        %2056 = vmatprep.subr.mxu0 0.0
        %2057 = vmatpush1.msra.mxu0 0.0
        %2058 = vmatprep.subr.mxu0 0.0
        %2059 = vmatpush1.msra.mxu0 0.0
        %2060 = vmatprep.subr.mxu0 0.0
        %2061 = vmatpush1.msra.mxu0 0.0
        %2062 = vmatprep.subr.mxu0 0.0
        %2063 = vmatpush1.msra.mxu0 0.0
        %2064 = vmatprep.subr.mxu0 0.0
        %2065 = vmatpush1.msra.mxu0 0.0
        %2066 = vmatprep.subr.mxu0 0.0
        %2067 = vmatpush1.msra.mxu0 0.0
        %2068 = vmatprep.subr.mxu0 0.0
        %2069 = vmatpush1.msra.mxu0 0.0
        %2070 = vmatprep.subr.mxu0 0.0
        %2071 = vmatpush1.msra.mxu0 0.0
        %2072 = vmatprep.subr.mxu0 0.0
        %2073 = vmatpush1.msra.mxu0 0.0
        %2074 = vmatprep.subr.mxu0 0.0
        %2075 = vmatpush1.msra.mxu0 0.0
        %2076 = vmatprep.subr.mxu0 0.0
        %2077 = vmatpush1.msra.mxu0 0.0
        %2078 = vmatprep.subr.mxu0 0.0
        %2079 = vmatpush1.msra.mxu0 0.0
        %2080 = vmatprep.subr.mxu0 0.0
        %2081 = vmatpush1.msra.mxu0 0.0
        %2082 = vmatprep.subr.mxu0 0.0
        %2083 = vmatpush1.msra.mxu0 0.0
        %2084 = vmatprep.subr.mxu0 0.0
        %2085 = vmatpush1.msra.mxu0 0.0
        %2086 = vmatprep.subr.mxu0 0.0
        %2087 = vmatpush1.msra.mxu0 0.0
        %2088 = vmatprep.subr.mxu0 0.0
        %2089 = vmatpush1.msra.mxu0 0.0
        %2090 = vmatprep.subr.mxu0 0.0
        %2091 = vmatpush1.msra.mxu0 0.0
        %2092 = vmatprep.subr.mxu0 0.0
        %2093 = vmatpush1.msra.mxu0 0.0
        %2094 = vmatprep.subr.mxu0 0.0
        %2095 = vmatpush1.msra.mxu0 0.0
        %2096 = vmatprep.subr.mxu0 0.0
        %2097 = vmatpush1.msra.mxu0 0.0
        %2098 = vmatprep.subr.mxu0 0.0
        %2099 = vmatpush1.msra.mxu0 0.0
        %2100 = vmatprep.subr.mxu0 0.0
        %2101 = vmatpush1.msra.mxu0 0.0
        %2102 = vmatprep.subr.mxu0 0.0
        %2103 = vmatpush1.msra.mxu0 0.0
        %2104 = vmatprep.mubr.f32.mxu0 0.0
        %2105 = vmatmul.mubr.f32.gmra.mrb[0].mxu0 %v2038
        %v2106 = vpop.f32.mrb[0].mxu0
        %v2107 = vadd.f32 0.0, %v2106
        %v2108 = vpop.f32.mrb[0].mxu0
        %2109 = vdwg.mxu0
        %v2111 = vsel %vm1992, %v2034, 0
        %2113 = vmatprep.subr.mxu0 0.0
        %2114 = vmatpush1.msra.mxu0 %v1604
        %2115 = vmatprep.subr.mxu0 0.0
        %2116 = vmatpush1.msra.mxu0 %v1672
        %2117 = vmatprep.subr.mxu0 0.0
        %2118 = vmatpush1.msra.mxu0 0.0
        %2119 = vmatprep.subr.mxu0 0.0
        %2120 = vmatpush1.msra.mxu0 0.0
        %2121 = vmatprep.subr.mxu0 0.0
        %2122 = vmatpush1.msra.mxu0 0.0
        %2123 = vmatprep.subr.mxu0 0.0
        %2124 = vmatpush1.msra.mxu0 0.0
        %2125 = vmatprep.subr.mxu0 0.0
        %2126 = vmatpush1.msra.mxu0 0.0
        %2127 = vmatprep.subr.mxu0 0.0
        %2128 = vmatpush1.msra.mxu0 0.0
        %2129 = vmatprep.subr.mxu0 0.0
        %2130 = vmatpush1.msra.mxu0 0.0
        %2131 = vmatprep.subr.mxu0 0.0
        %2132 = vmatpush1.msra.mxu0 0.0
        %2133 = vmatprep.subr.mxu0 0.0
        %2134 = vmatpush1.msra.mxu0 0.0
        %2135 = vmatprep.subr.mxu0 0.0
        %2136 = vmatpush1.msra.mxu0 0.0
        %2137 = vmatprep.subr.mxu0 0.0
        %2138 = vmatpush1.msra.mxu0 0.0
        %2139 = vmatprep.subr.mxu0 0.0
        %2140 = vmatpush1.msra.mxu0 0.0
        %2141 = vmatprep.subr.mxu0 0.0
        %2142 = vmatpush1.msra.mxu0 0.0
        %2143 = vmatprep.subr.mxu0 0.0
        %2144 = vmatpush1.msra.mxu0 0.0
        %2145 = vmatprep.subr.mxu0 0.0
        %2146 = vmatpush1.msra.mxu0 0.0
        %2147 = vmatprep.subr.mxu0 0.0
        %2148 = vmatpush1.msra.mxu0 0.0
        %2149 = vmatprep.subr.mxu0 0.0
        %2150 = vmatpush1.msra.mxu0 0.0
        %2151 = vmatprep.subr.mxu0 0.0
        %2152 = vmatpush1.msra.mxu0 0.0
        %2153 = vmatprep.subr.mxu0 0.0
        %2154 = vmatpush1.msra.mxu0 0.0
        %2155 = vmatprep.subr.mxu0 0.0
        %2156 = vmatpush1.msra.mxu0 0.0
        %2157 = vmatprep.subr.mxu0 0.0
        %2158 = vmatpush1.msra.mxu0 0.0
        %2159 = vmatprep.subr.mxu0 0.0
        %2160 = vmatpush1.msra.mxu0 0.0
        %2161 = vmatprep.subr.mxu0 0.0
        %2162 = vmatpush1.msra.mxu0 0.0
        %2163 = vmatprep.subr.mxu0 0.0
        %2164 = vmatpush1.msra.mxu0 0.0
        %2165 = vmatprep.subr.mxu0 0.0
        %2166 = vmatpush1.msra.mxu0 0.0
        %2167 = vmatprep.subr.mxu0 0.0
        %2168 = vmatpush1.msra.mxu0 0.0
        %2169 = vmatprep.subr.mxu0 0.0
        %2170 = vmatpush1.msra.mxu0 0.0
        %2171 = vmatprep.subr.mxu0 0.0
        %2172 = vmatpush1.msra.mxu0 0.0
        %2173 = vmatprep.subr.mxu0 0.0
        %2174 = vmatpush1.msra.mxu0 0.0
        %2175 = vmatprep.subr.mxu0 0.0
        %2176 = vmatpush1.msra.mxu0 0.0
        %2177 = vmatprep.mubr.f32.mxu0 0.0
        %2178 = vmatmul.mubr.f32.gmra.mrb[0].mxu0 %v2111
        %v2179 = vpop.f32.mrb[0].mxu0
        %v2180 = vadd.f32 0.0, %v2179
        %v2181 = vpop.f32.mrb[0].mxu0
        %2182 = vdwg.mxu0
        %v2184 = vsel %vm1992, %v2035, 0
        %2186 = vmatprep.subr.mxu0 0.0
        %2187 = vmatpush1.msra.mxu0 %v1605
        %2188 = vmatprep.subr.mxu0 0.0
        %2189 = vmatpush1.msra.mxu0 %v1673
        %2190 = vmatprep.subr.mxu0 0.0
        %2191 = vmatpush1.msra.mxu0 0.0
        %2192 = vmatprep.subr.mxu0 0.0
        %2193 = vmatpush1.msra.mxu0 0.0
        %2194 = vmatprep.subr.mxu0 0.0
        %2195 = vmatpush1.msra.mxu0 0.0
        %2196 = vmatprep.subr.mxu0 0.0
        %2197 = vmatpush1.msra.mxu0 0.0
        %2198 = vmatprep.subr.mxu0 0.0
        %2199 = vmatpush1.msra.mxu0 0.0
        %2200 = vmatprep.subr.mxu0 0.0
        %2201 = vmatpush1.msra.mxu0 0.0
        %2202 = vmatprep.subr.mxu0 0.0
        %2203 = vmatpush1.msra.mxu0 0.0
        %2204 = vmatprep.subr.mxu0 0.0
        %2205 = vmatpush1.msra.mxu0 0.0
        %2206 = vmatprep.subr.mxu0 0.0
        %2207 = vmatpush1.msra.mxu0 0.0
        %2208 = vmatprep.subr.mxu0 0.0
        %2209 = vmatpush1.msra.mxu0 0.0
        %2210 = vmatprep.subr.mxu0 0.0
        %2211 = vmatpush1.msra.mxu0 0.0
        %2212 = vmatprep.subr.mxu0 0.0
        %2213 = vmatpush1.msra.mxu0 0.0
        %2214 = vmatprep.subr.mxu0 0.0
        %2215 = vmatpush1.msra.mxu0 0.0
        %2216 = vmatprep.subr.mxu0 0.0
        %2217 = vmatpush1.msra.mxu0 0.0
        %2218 = vmatprep.subr.mxu0 0.0
        %2219 = vmatpush1.msra.mxu0 0.0
        %2220 = vmatprep.subr.mxu0 0.0
        %2221 = vmatpush1.msra.mxu0 0.0
        %2222 = vmatprep.subr.mxu0 0.0
        %2223 = vmatpush1.msra.mxu0 0.0
        %2224 = vmatprep.subr.mxu0 0.0
        %2225 = vmatpush1.msra.mxu0 0.0
        %2226 = vmatprep.subr.mxu0 0.0
        %2227 = vmatpush1.msra.mxu0 0.0
        %2228 = vmatprep.subr.mxu0 0.0
        %2229 = vmatpush1.msra.mxu0 0.0
        %2230 = vmatprep.subr.mxu0 0.0
        %2231 = vmatpush1.msra.mxu0 0.0
        %2232 = vmatprep.subr.mxu0 0.0
        %2233 = vmatpush1.msra.mxu0 0.0
        %2234 = vmatprep.subr.mxu0 0.0
        %2235 = vmatpush1.msra.mxu0 0.0
        %2236 = vmatprep.subr.mxu0 0.0
        %2237 = vmatpush1.msra.mxu0 0.0
        %2238 = vmatprep.subr.mxu0 0.0
        %2239 = vmatpush1.msra.mxu0 0.0
        %2240 = vmatprep.subr.mxu0 0.0
        %2241 = vmatpush1.msra.mxu0 0.0
        %2242 = vmatprep.subr.mxu0 0.0
        %2243 = vmatpush1.msra.mxu0 0.0
        %2244 = vmatprep.subr.mxu0 0.0
        %2245 = vmatpush1.msra.mxu0 0.0
        %2246 = vmatprep.subr.mxu0 0.0
        %2247 = vmatpush1.msra.mxu0 0.0
        %2248 = vmatprep.subr.mxu0 0.0
        %2249 = vmatpush1.msra.mxu0 0.0
        %2250 = vmatprep.mubr.f32.mxu0 0.0
        %2251 = vmatmul.mubr.f32.gmra.mrb[0].mxu0 %v2184
        %v2252 = vpop.f32.mrb[0].mxu0
        %v2253 = vadd.f32 0.0, %v2252
        %v2254 = vpop.f32.mrb[0].mxu0
        %2255 = vdwg.mxu0
        %v2257 = vsel %vm1992, %v2036, 0
        %2259 = vmatprep.subr.mxu0 0.0
        %2260 = vmatpush1.msra.mxu0 %v1606
        %2261 = vmatprep.subr.mxu0 0.0
        %2262 = vmatpush1.msra.mxu0 %v1674
        %2263 = vmatprep.subr.mxu0 0.0
        %2264 = vmatpush1.msra.mxu0 0.0
        %2265 = vmatprep.subr.mxu0 0.0
        %2266 = vmatpush1.msra.mxu0 0.0
        %2267 = vmatprep.subr.mxu0 0.0
        %2268 = vmatpush1.msra.mxu0 0.0
        %2269 = vmatprep.subr.mxu0 0.0
        %2270 = vmatpush1.msra.mxu0 0.0
        %2271 = vmatprep.subr.mxu0 0.0
        %2272 = vmatpush1.msra.mxu0 0.0
        %2273 = vmatprep.subr.mxu0 0.0
        %2274 = vmatpush1.msra.mxu0 0.0
        %2275 = vmatprep.subr.mxu0 0.0
        %2276 = vmatpush1.msra.mxu0 0.0
        %2277 = vmatprep.subr.mxu0 0.0
        %2278 = vmatpush1.msra.mxu0 0.0
        %2279 = vmatprep.subr.mxu0 0.0
        %2280 = vmatpush1.msra.mxu0 0.0
        %2281 = vmatprep.subr.mxu0 0.0
        %2282 = vmatpush1.msra.mxu0 0.0
        %2283 = vmatprep.subr.mxu0 0.0
        %2284 = vmatpush1.msra.mxu0 0.0
        %2285 = vmatprep.subr.mxu0 0.0
        %2286 = vmatpush1.msra.mxu0 0.0
        %2287 = vmatprep.subr.mxu0 0.0
        %2288 = vmatpush1.msra.mxu0 0.0
        %2289 = vmatprep.subr.mxu0 0.0
        %2290 = vmatpush1.msra.mxu0 0.0
        %2291 = vmatprep.subr.mxu0 0.0
        %2292 = vmatpush1.msra.mxu0 0.0
        %2293 = vmatprep.subr.mxu0 0.0
        %2294 = vmatpush1.msra.mxu0 0.0
        %2295 = vmatprep.subr.mxu0 0.0
        %2296 = vmatpush1.msra.mxu0 0.0
        %2297 = vmatprep.subr.mxu0 0.0
        %2298 = vmatpush1.msra.mxu0 0.0
        %2299 = vmatprep.subr.mxu0 0.0
        %2300 = vmatpush1.msra.mxu0 0.0
        %2301 = vmatprep.subr.mxu0 0.0
        %2302 = vmatpush1.msra.mxu0 0.0
        %2303 = vmatprep.subr.mxu0 0.0
        %2304 = vmatpush1.msra.mxu0 0.0
        %2305 = vmatprep.subr.mxu0 0.0
        %2306 = vmatpush1.msra.mxu0 0.0
        %2307 = vmatprep.subr.mxu0 0.0
        %2308 = vmatpush1.msra.mxu0 0.0
        %2309 = vmatprep.subr.mxu0 0.0
        %2310 = vmatpush1.msra.mxu0 0.0
        %2311 = vmatprep.subr.mxu0 0.0
        %2312 = vmatpush1.msra.mxu0 0.0
        %2313 = vmatprep.subr.mxu0 0.0
        %2314 = vmatpush1.msra.mxu0 0.0
        %2315 = vmatprep.subr.mxu0 0.0
        %2316 = vmatpush1.msra.mxu0 0.0
        %2317 = vmatprep.subr.mxu0 0.0
        %2318 = vmatpush1.msra.mxu0 0.0
        %2319 = vmatprep.subr.mxu0 0.0
        %2320 = vmatpush1.msra.mxu0 0.0
        %2321 = vmatprep.subr.mxu0 0.0
        %2322 = vmatpush1.msra.mxu0 0.0
        %2323 = vmatprep.mubr.f32.mxu0 0.0
        %2324 = vmatmul.mubr.f32.gmra.mrb[0].mxu0 %v2257
        %v2325 = vpop.f32.mrb[0].mxu0
        %v2326 = vadd.f32 0.0, %v2325
        %v2327 = vpop.f32.mrb[0].mxu0
        %2328 = vdwg.mxu0
        %v2329 = vcombine.low %v2107, %v2253
        %v2330 = vcombine.high %v2107, %v2253
        %v2332 = vunpack.c.l.s4 1983009808
        %v2333 = vunpack.c.0.s8 %v2332
        %v2334 = vlaneseq
        %v2335 = vshrl.u32 %v2334, 7
        %v2336 = vsub.s32 %v2333, %v2335
        %v2337 = vrot.slane %v2329, %v2336
        %v2339 = vunpack.c.l.s4 1983009808
        %v2340 = vunpack.c.0.s8 %v2339
        %v2341 = vlaneseq
        %v2342 = vshrl.u32 %v2341, 7
        %v2343 = vsub.s32 %v2340, %v2342
        %v2344 = vrot.slane %v2330, %v2343
        %v2345 = vcombine.low %v2180, %v2326
        %v2346 = vcombine.high %v2180, %v2326
        %v2348 = vunpack.c.l.s4 1983009808
        %v2349 = vunpack.c.0.s8 %v2348
        %v2350 = vlaneseq
        %v2351 = vshrl.u32 %v2350, 7
        %v2352 = vsub.s32 %v2349, %v2351
        %v2353 = vrot.slane %v2345, %v2352
        %v2355 = vunpack.c.l.s4 1983009808
        %v2356 = vunpack.c.0.s8 %v2355
        %v2357 = vlaneseq
        %v2358 = vshrl.u32 %v2357, 7
        %v2359 = vsub.s32 %v2356, %v2358
        %v2360 = vrot.slane %v2346, %v2359
        %v2361 = vcombine.low %v2337, %v2353
        %v2362 = vcombine.high %v2337, %v2353
        %v2364 = vunpack.c.l.s4 1934713408
        %v2365 = vunpack.c.0.s8 %v2364
        %v2366 = vlaneseq
        %v2367 = vshrl.u32 %v2366, 7
        %v2368 = vsub.s32 %v2365, %v2367
        %v2369 = vrot.slane %v2361, %v2368
        %v2371 = vunpack.c.l.s4 1934713408
        %v2372 = vunpack.c.0.s8 %v2371
        %v2373 = vlaneseq
        %v2374 = vshrl.u32 %v2373, 7
        %v2375 = vsub.s32 %v2372, %v2374
        %v2376 = vrot.slane %v2362, %v2375
        %v2377 = vcombine.low %v2344, %v2360
        %v2378 = vcombine.high %v2344, %v2360
        %v2380 = vunpack.c.l.s4 1934713408
        %v2381 = vunpack.c.0.s8 %v2380
        %v2382 = vlaneseq
        %v2383 = vshrl.u32 %v2382, 7
        %v2384 = vsub.s32 %v2381, %v2383
        %v2385 = vrot.slane %v2377, %v2384
        %v2387 = vunpack.c.l.s4 1934713408
        %v2388 = vunpack.c.0.s8 %v2387
        %v2389 = vlaneseq
        %v2390 = vshrl.u32 %v2389, 7
        %v2391 = vsub.s32 %v2388, %v2390
        %v2392 = vrot.slane %v2378, %v2391
        %v2393 = vcombine.high %v2369, 0.0
        %v2394 = vcombine.high %v2376, 0.0
        %v2395 = vcombine.high %v2385, 0.0
        %v2396 = vcombine.high %v2392, 0.0
        %v2397 = vcombine.low %v2369, %v2376
        %v2399 = vunpack.c.l.s4 1983009808
        %v2400 = vunpack.c.0.s8 %v2399
        %v2401 = vlaneseq
        %v2402 = vshrl.u32 %v2401, 7
        %v2403 = vsub.s32 %v2400, %v2402
        %v2404 = vrot.slane %v2397, %v2403
        %v2405 = vcombine.low %v2393, %v2394
        %v2407 = vunpack.c.l.s4 1983009808
        %v2408 = vunpack.c.0.s8 %v2407
        %v2409 = vlaneseq
        %v2410 = vshrl.u32 %v2409, 7
        %v2411 = vsub.s32 %v2408, %v2410
        %v2412 = vrot.slane %v2405, %v2411
        %v2413 = vcombine.low %v2385, %v2392
        %v2415 = vunpack.c.l.s4 1983009808
        %v2416 = vunpack.c.0.s8 %v2415
        %v2417 = vlaneseq
        %v2418 = vshrl.u32 %v2417, 7
        %v2419 = vsub.s32 %v2416, %v2418
        %v2420 = vrot.slane %v2413, %v2419
        %v2421 = vcombine.low %v2395, %v2396
        %v2423 = vunpack.c.l.s4 1983009808
        %v2424 = vunpack.c.0.s8 %v2423
        %v2425 = vlaneseq
        %v2426 = vshrl.u32 %v2425, 7
        %v2427 = vsub.s32 %v2424, %v2426
        %v2428 = vrot.slane %v2421, %v2427
        %v2429 = vcombine.low %v2404, %v2412
        %v2430 = vcombine.high %v2404, %v2412
        %v2432 = vunpack.c.l.s4 1934713408
        %v2433 = vunpack.c.0.s8 %v2432
        %v2434 = vlaneseq
        %v2435 = vshrl.u32 %v2434, 7
        %v2436 = vsub.s32 %v2433, %v2435
        %v2437 = vrot.slane %v2429, %v2436
        %v2439 = vunpack.c.l.s4 1934713408
        %v2440 = vunpack.c.0.s8 %v2439
        %v2441 = vlaneseq
        %v2442 = vshrl.u32 %v2441, 7
        %v2443 = vsub.s32 %v2440, %v2442
        %v2444 = vrot.slane %v2430, %v2443
        %v2445 = vcombine.low %v2420, %v2428
        %v2446 = vcombine.high %v2420, %v2428
        %v2448 = vunpack.c.l.s4 1934713408
        %v2449 = vunpack.c.0.s8 %v2448
        %v2450 = vlaneseq
        %v2451 = vshrl.u32 %v2450, 7
        %v2452 = vsub.s32 %v2449, %v2451
        %v2453 = vrot.slane %v2445, %v2452
        %v2455 = vunpack.c.l.s4 1934713408
        %v2456 = vunpack.c.0.s8 %v2455
        %v2457 = vlaneseq
        %v2458 = vshrl.u32 %v2457, 7
        %v2459 = vsub.s32 %v2456, %v2458
        %v2460 = vrot.slane %v2446, %v2459
        %v2461 = vcombine.low %v2437, %v2453
        %v2462 = vcombine.high %v2437, %v2453
        %v2463 = vcombine.low %v2444, %v2460
        %v2464 = vcombine.high %v2444, %v2460
        %2466 = vrot.lane.b32.xlu0 %v2462, 8
        %v2467 = vpop.permute.xlu0 %2466
        %2470 = vrot.lane.b32.xlu0 %v2463, 16
        %v2471 = vpop.permute.xlu0 %2470
        %2474 = vrot.lane.b32.xlu0 %v2464, 24
        %v2475 = vpop.permute.xlu0 %2474
        %v2477 = vsel %vm1675, %v2461, %v2467
        %v2478 = vsel %vm1992, %v2477, %v2471
        %vm2479 = vcmask 195584
        %v2480 = vsel %vm2479, %v2478, %v2475
        %v2481 = vld [vmem:[#allocation7] sm:$0xff]
        %v2482 = vld [vmem:[#allocation7 + $0x8] sm:$0xff]
        %v2483 = vld [vmem:[#allocation7 + $0x10] sm:$0xff]
        %v2484 = vld [vmem:[#allocation7 + $0x18] sm:$0xff]
        %v2485 = vld [vmem:[%s9] sm:$0x1]
        %v2487 = vlaneseq
        %v2488 = vshrl.u32 %v2487, 7
        %v2489 = vsub.s32 0, %v2488
        %v2490 = vrot.slane %v2485, %v2489
        %v2493 = vsel %vm692, %v2480, 0
        %2495 = vmatprep.subr.mxu0 0.0
        %2496 = vmatpush1.msra.mxu0 %v2481
        %2497 = vmatprep.subr.mxu0 0.0
        %2498 = vmatpush1.msra.mxu0 %v2482
        %2499 = vmatprep.subr.mxu0 0.0
        %2500 = vmatpush1.msra.mxu0 %v2483
        %2501 = vmatprep.subr.mxu0 0.0
        %2502 = vmatpush1.msra.mxu0 %v2484
        %2503 = vmatprep.subr.mxu0 0.0
        %2504 = vmatpush1.msra.mxu0 0.0
        %2505 = vmatprep.subr.mxu0 0.0
        %2506 = vmatpush1.msra.mxu0 0.0
        %2507 = vmatprep.subr.mxu0 0.0
        %2508 = vmatpush1.msra.mxu0 0.0
        %2509 = vmatprep.subr.mxu0 0.0
        %2510 = vmatpush1.msra.mxu0 0.0
        %2511 = vmatprep.subr.mxu0 0.0
        %2512 = vmatpush1.msra.mxu0 0.0
        %2513 = vmatprep.subr.mxu0 0.0
        %2514 = vmatpush1.msra.mxu0 0.0
        %2515 = vmatprep.subr.mxu0 0.0
        %2516 = vmatpush1.msra.mxu0 0.0
        %2517 = vmatprep.subr.mxu0 0.0
        %2518 = vmatpush1.msra.mxu0 0.0
        %2519 = vmatprep.subr.mxu0 0.0
        %2520 = vmatpush1.msra.mxu0 0.0
        %2521 = vmatprep.subr.mxu0 0.0
        %2522 = vmatpush1.msra.mxu0 0.0
        %2523 = vmatprep.subr.mxu0 0.0
        %2524 = vmatpush1.msra.mxu0 0.0
        %2525 = vmatprep.subr.mxu0 0.0
        %2526 = vmatpush1.msra.mxu0 0.0
        %2527 = vmatprep.subr.mxu0 0.0
        %2528 = vmatpush1.msra.mxu0 0.0
        %2529 = vmatprep.subr.mxu0 0.0
        %2530 = vmatpush1.msra.mxu0 0.0
        %2531 = vmatprep.subr.mxu0 0.0
        %2532 = vmatpush1.msra.mxu0 0.0
        %2533 = vmatprep.subr.mxu0 0.0
        %2534 = vmatpush1.msra.mxu0 0.0
        %2535 = vmatprep.subr.mxu0 0.0
        %2536 = vmatpush1.msra.mxu0 0.0
        %2537 = vmatprep.subr.mxu0 0.0
        %2538 = vmatpush1.msra.mxu0 0.0
        %2539 = vmatprep.subr.mxu0 0.0
        %2540 = vmatpush1.msra.mxu0 0.0
        %2541 = vmatprep.subr.mxu0 0.0
        %2542 = vmatpush1.msra.mxu0 0.0
        %2543 = vmatprep.subr.mxu0 0.0
        %2544 = vmatpush1.msra.mxu0 0.0
        %2545 = vmatprep.subr.mxu0 0.0
        %2546 = vmatpush1.msra.mxu0 0.0
        %2547 = vmatprep.subr.mxu0 0.0
        %2548 = vmatpush1.msra.mxu0 0.0
        %2549 = vmatprep.subr.mxu0 0.0
        %2550 = vmatpush1.msra.mxu0 0.0
        %2551 = vmatprep.subr.mxu0 0.0
        %2552 = vmatpush1.msra.mxu0 0.0
        %2553 = vmatprep.subr.mxu0 0.0
        %2554 = vmatpush1.msra.mxu0 0.0
        %2555 = vmatprep.subr.mxu0 0.0
        %2556 = vmatpush1.msra.mxu0 0.0
        %2557 = vmatprep.subr.mxu0 0.0
        %2558 = vmatpush1.msra.mxu0 0.0
        %2559 = vmatprep.mubr.f32.mxu0 0.0
        %2560 = vmatmul.mubr.f32.gmra.mrb[0].mxu0 %v2493
        %v2561 = vpop.f32.mrb[0].mxu0
        %v2562 = vadd.f32 %v2490, %v2561
        %v2563 = vpop.f32.mrb[0].mxu0
        %2564 = vdwg.mxu0
        %v2565 = vadd.f32 %v680, %v2562
        %v2566 = vld [vmem:[%s10] sm:$0x1]
        %v2567 = vld [vmem:[%s11] sm:$0x1]
        %v2568 = vsel %vm692, %v2565, 0.0
        %2569 = vadd.xlane.f32.xlu0 %v2568
        %v2570 = vpop.xlane.xlu0 %2569
        %v2571 = vrcp.pop 32.0
        %v2572 = vmul.f32 %v2570, %v2571
        %v2573 = vsub.f32 %v2565, %v2572
        %v2574 = vmul.f32 %v2573, %v2573
        %v2575 = vsel %vm692, %v2574, 0.0
        %2576 = vadd.xlane.f32.xlu0 %v2575
        %v2577 = vpop.xlane.xlu0 %2576
        %v2578 = vmul.f32 %v2577, %v2571
        %v2579 = vadd.f32 %v2578, 1e-05
        %v2580 = vrsqrt.pop %v2579
        %v2581 = vmul.f32 %v2573, %v2580
        %v2583 = vlaneseq
        %v2584 = vshrl.u32 %v2583, 7
        %v2585 = vsub.s32 0, %v2584
        %v2586 = vrot.slane %v2566, %v2585
        %v2588 = vmul.f32 %v2581, %v2586
        %v2590 = vlaneseq
        %v2591 = vshrl.u32 %v2590, 7
        %v2592 = vsub.s32 0, %v2591
        %v2593 = vrot.slane %v2567, %v2592
        %v2595 = vadd.f32 %v2588, %v2593
        %v2596 = vld [vmem:[#allocation8] sm:$0xff]
        %v2597 = vld [vmem:[#allocation8 + $0x8] sm:$0xff]
        %v2598 = vld [vmem:[#allocation8 + $0x10] sm:$0xff]
        %v2599 = vld [vmem:[#allocation8 + $0x18] sm:$0xff]
        %v2600 = vld [vmem:[%s13] sm:$0x1]
        %v2602 = vlaneseq
        %v2603 = vshrl.u32 %v2602, 7
        %v2604 = vsub.s32 0, %v2603
        %v2605 = vrot.slane %v2600, %v2604
        %v2608 = vsel %vm692, %v2595, 0
        %2610 = vmatprep.subr.mxu0 0.0
        %2611 = vmatpush1.msra.mxu0 %v2596
        %2612 = vmatprep.subr.mxu0 0.0
        %2613 = vmatpush1.msra.mxu0 %v2597
        %2614 = vmatprep.subr.mxu0 0.0
        %2615 = vmatpush1.msra.mxu0 %v2598
        %2616 = vmatprep.subr.mxu0 0.0
        %2617 = vmatpush1.msra.mxu0 %v2599
        %2618 = vmatprep.subr.mxu0 0.0
        %2619 = vmatpush1.msra.mxu0 0.0
        %2620 = vmatprep.subr.mxu0 0.0
        %2621 = vmatpush1.msra.mxu0 0.0
        %2622 = vmatprep.subr.mxu0 0.0
        %2623 = vmatpush1.msra.mxu0 0.0
        %2624 = vmatprep.subr.mxu0 0.0
        %2625 = vmatpush1.msra.mxu0 0.0
        %2626 = vmatprep.subr.mxu0 0.0
        %2627 = vmatpush1.msra.mxu0 0.0
        %2628 = vmatprep.subr.mxu0 0.0
        %2629 = vmatpush1.msra.mxu0 0.0
        %2630 = vmatprep.subr.mxu0 0.0
        %2631 = vmatpush1.msra.mxu0 0.0
        %2632 = vmatprep.subr.mxu0 0.0
        %2633 = vmatpush1.msra.mxu0 0.0
        %2634 = vmatprep.subr.mxu0 0.0
        %2635 = vmatpush1.msra.mxu0 0.0
        %2636 = vmatprep.subr.mxu0 0.0
        %2637 = vmatpush1.msra.mxu0 0.0
        %2638 = vmatprep.subr.mxu0 0.0
        %2639 = vmatpush1.msra.mxu0 0.0
        %2640 = vmatprep.subr.mxu0 0.0
        %2641 = vmatpush1.msra.mxu0 0.0
        %2642 = vmatprep.subr.mxu0 0.0
        %2643 = vmatpush1.msra.mxu0 0.0
        %2644 = vmatprep.subr.mxu0 0.0
        %2645 = vmatpush1.msra.mxu0 0.0
        %2646 = vmatprep.subr.mxu0 0.0
        %2647 = vmatpush1.msra.mxu0 0.0
        %2648 = vmatprep.subr.mxu0 0.0
        %2649 = vmatpush1.msra.mxu0 0.0
        %2650 = vmatprep.subr.mxu0 0.0
        %2651 = vmatpush1.msra.mxu0 0.0
        %2652 = vmatprep.subr.mxu0 0.0
        %2653 = vmatpush1.msra.mxu0 0.0
        %2654 = vmatprep.subr.mxu0 0.0
        %2655 = vmatpush1.msra.mxu0 0.0
        %2656 = vmatprep.subr.mxu0 0.0
        %2657 = vmatpush1.msra.mxu0 0.0
        %2658 = vmatprep.subr.mxu0 0.0
        %2659 = vmatpush1.msra.mxu0 0.0
        %2660 = vmatprep.subr.mxu0 0.0
        %2661 = vmatpush1.msra.mxu0 0.0
        %2662 = vmatprep.subr.mxu0 0.0
        %2663 = vmatpush1.msra.mxu0 0.0
        %2664 = vmatprep.subr.mxu0 0.0
        %2665 = vmatpush1.msra.mxu0 0.0
        %2666 = vmatprep.subr.mxu0 0.0
        %2667 = vmatpush1.msra.mxu0 0.0
        %2668 = vmatprep.subr.mxu0 0.0
        %2669 = vmatpush1.msra.mxu0 0.0
        %2670 = vmatprep.subr.mxu0 0.0
        %2671 = vmatpush1.msra.mxu0 0.0
        %2672 = vmatprep.subr.mxu0 0.0
        %2673 = vmatpush1.msra.mxu0 0.0
        %2674 = vmatprep.mubr.f32.mxu0 0.0
        %2675 = vmatmul.mubr.f32.gmra.mrb[0].mxu0 %v2608
        %v2676 = vpop.f32.mrb[0].mxu0
        %v2677 = vadd.f32 %v2605, %v2676
        %v2678 = vpop.f32.mrb[0].mxu0
        %2679 = vdwg.mxu0
        %v2680 = vmax.f32 %v2677, 0.0
        %v2681 = vld [vmem:[%s14] sm:$0xff]
        %v2682 = vld [vmem:[%s14 + $0x8] sm:$0xff]
        %v2683 = vld [vmem:[%s14 + $0x10] sm:$0xff]
        %v2684 = vld [vmem:[%s14 + $0x18] sm:$0xff]
        %v2685 = vld [vmem:[%s14 + $0x20] sm:$0xff]
        %v2686 = vld [vmem:[%s14 + $0x28] sm:$0xff]
        %v2687 = vld [vmem:[%s14 + $0x30] sm:$0xff]
        %v2688 = vld [vmem:[%s14 + $0x38] sm:$0xff]
        %v2689 = vld [vmem:[%s15] sm:$0x1]
        %v2691 = vlaneseq
        %v2692 = vshrl.u32 %v2691, 7
        %v2693 = vsub.s32 0, %v2692
        %v2694 = vrot.slane %v2689, %v2693
        %vm2696 = vcmask 523264
        %v2698 = vsel %vm2696, %v2680, 0
        %2700 = vmatprep.subr.mxu0 0.0
        %2701 = vmatpush1.msra.mxu0 %v2681
        %2702 = vmatprep.subr.mxu0 0.0
        %2703 = vmatpush1.msra.mxu0 %v2682
        %2704 = vmatprep.subr.mxu0 0.0
        %2705 = vmatpush1.msra.mxu0 %v2683
        %2706 = vmatprep.subr.mxu0 0.0
        %2707 = vmatpush1.msra.mxu0 %v2684
        %2708 = vmatprep.subr.mxu0 0.0
        %2709 = vmatpush1.msra.mxu0 %v2685
        %2710 = vmatprep.subr.mxu0 0.0
        %2711 = vmatpush1.msra.mxu0 %v2686
        %2712 = vmatprep.subr.mxu0 0.0
        %2713 = vmatpush1.msra.mxu0 %v2687
        %2714 = vmatprep.subr.mxu0 0.0
        %2715 = vmatpush1.msra.mxu0 %v2688
        %2716 = vmatprep.subr.mxu0 0.0
        %2717 = vmatpush1.msra.mxu0 0.0
        %2718 = vmatprep.subr.mxu0 0.0
        %2719 = vmatpush1.msra.mxu0 0.0
        %2720 = vmatprep.subr.mxu0 0.0
        %2721 = vmatpush1.msra.mxu0 0.0
        %2722 = vmatprep.subr.mxu0 0.0
        %2723 = vmatpush1.msra.mxu0 0.0
        %2724 = vmatprep.subr.mxu0 0.0
        %2725 = vmatpush1.msra.mxu0 0.0
        %2726 = vmatprep.subr.mxu0 0.0
        %2727 = vmatpush1.msra.mxu0 0.0
        %2728 = vmatprep.subr.mxu0 0.0
        %2729 = vmatpush1.msra.mxu0 0.0
        %2730 = vmatprep.subr.mxu0 0.0
        %2731 = vmatpush1.msra.mxu0 0.0
        %2732 = vmatprep.subr.mxu0 0.0
        %2733 = vmatpush1.msra.mxu0 0.0
        %2734 = vmatprep.subr.mxu0 0.0
        %2735 = vmatpush1.msra.mxu0 0.0
        %2736 = vmatprep.subr.mxu0 0.0
        %2737 = vmatpush1.msra.mxu0 0.0
        %2738 = vmatprep.subr.mxu0 0.0
        %2739 = vmatpush1.msra.mxu0 0.0
        %2740 = vmatprep.subr.mxu0 0.0
        %2741 = vmatpush1.msra.mxu0 0.0
        %2742 = vmatprep.subr.mxu0 0.0
        %2743 = vmatpush1.msra.mxu0 0.0
        %2744 = vmatprep.subr.mxu0 0.0
        %2745 = vmatpush1.msra.mxu0 0.0
        %2746 = vmatprep.subr.mxu0 0.0
        %2747 = vmatpush1.msra.mxu0 0.0
        %2748 = vmatprep.subr.mxu0 0.0
        %2749 = vmatpush1.msra.mxu0 0.0
        %2750 = vmatprep.subr.mxu0 0.0
        %2751 = vmatpush1.msra.mxu0 0.0
        %2752 = vmatprep.subr.mxu0 0.0
        %2753 = vmatpush1.msra.mxu0 0.0
        %2754 = vmatprep.subr.mxu0 0.0
        %2755 = vmatpush1.msra.mxu0 0.0
        %2756 = vmatprep.subr.mxu0 0.0
        %2757 = vmatpush1.msra.mxu0 0.0
        %2758 = vmatprep.subr.mxu0 0.0
        %2759 = vmatpush1.msra.mxu0 0.0
        %2760 = vmatprep.subr.mxu0 0.0
        %2761 = vmatpush1.msra.mxu0 0.0
        %2762 = vmatprep.subr.mxu0 0.0
        %2763 = vmatpush1.msra.mxu0 0.0
        %2764 = vmatprep.mubr.f32.mxu0 0.0
        %2765 = vmatmul.mubr.f32.gmra.mrb[0].mxu0 %v2698
        %v2766 = vpop.f32.mrb[0].mxu0
        %v2767 = vadd.f32 %v2694, %v2766
        %v2768 = vpop.f32.mrb[0].mxu0
        %2769 = vdwg.mxu0
        %v2770 = vadd.f32 %v2595, %v2767
        %v2771 = vld [vmem:[%s16] sm:$0x1]
        %v2772 = vld [vmem:[%s17] sm:$0x1]
        %v2773 = vsel %vm692, %v2770, 0.0
        %2774 = vadd.xlane.f32.xlu0 %v2773
        %v2775 = vpop.xlane.xlu0 %2774
        %v2776 = vmul.f32 %v2775, %v2571
        %v2777 = vsub.f32 %v2770, %v2776
        %v2778 = vmul.f32 %v2777, %v2777
        %v2779 = vsel %vm692, %v2778, 0.0
        %2780 = vadd.xlane.f32.xlu0 %v2779
        %v2781 = vpop.xlane.xlu0 %2780
        %v2782 = vmul.f32 %v2781, %v2571
        %v2783 = vadd.f32 %v2782, 1e-05
        %v2784 = vrsqrt.pop %v2783
        %v2785 = vmul.f32 %v2777, %v2784
        %v2787 = vlaneseq
        %v2788 = vshrl.u32 %v2787, 7
        %v2789 = vsub.s32 0, %v2788
        %v2790 = vrot.slane %v2771, %v2789
        %v2792 = vmul.f32 %v2785, %v2790
        %v2794 = vlaneseq
        %v2795 = vshrl.u32 %v2794, 7
        %v2796 = vsub.s32 0, %v2795
        %v2797 = vrot.slane %v2772, %v2796
        %v2799 = vadd.f32 %v2792, %v2797
        %2800 = vst.msk [vmem:[%s664] sm:$0xff] %vm692, %v2799
        %s2801 = sand.u32 %s447, 1
        %s2802 = scalar_lea.sflag [#allocation4], %s2801
        %s2803 = sand.u32 %s447, 1
        %s2804 = smul.addr %s2803, 8
        %s2805 = scalar_lea.vmem [#allocation10], %s2804
        // Predicated region
        $region109: #{tpu_custom_call.1} parent=91 // pred_check
          %p2806 = pneg %p457
        $region110: #{tpu_custom_call.1} parent=91 // pred_check_branch
          %2808 = sbr.rel (%p2806) target = $region112
        $region111: #{tpu_custom_call.1} parent=91 // pred_region
          %s2810 = ssub.s32 128, 128
          %2811 = vsyncadd %s2802, %s2810
          %s2812 = smul.addr %s39, 2
          %s2813 = sadd.s32 %s40, %s2812
          %s2814 = smul.addr %s2813, 128
          %s2815 = scalar_lea.hbm %s18, %s2814
          %s2817 = sshll.u32 %s2805, 4
          %s2818 = int_to_ptr.vmem [resolvable:$true] %s2817
          %2820 = dma.vmem_to_hbm [thread:$0]  %s2818, 128, %s2815, %s2802
        $region112: #{tpu_custom_call.1} parent=91 // pred_fallthru
          _
      $region92: #{tpu_custom_call.1} parent=5 // pred_fallthru
        _
      %p2821 = scmp.le.s32.totalorder 2, %s30
      // Predicated region
      $region113: #{tpu_custom_call.1} parent=5 // pred_check
        %p2822 = pneg %p2821
      $region114: #{tpu_custom_call.1} parent=5 // pred_check_branch
        %2824 = sbr.rel (%p2822) target = $region116
      $region115: #{tpu_custom_call.1} parent=5 // pred_region
        %s2825 = ssub.s32 %s30, 2
        // Predicated region
        $region117: #{tpu_custom_call.1} parent=115 // pred_check
          %p2826 = pneg %p463
        $region118: #{tpu_custom_call.1} parent=115 // pred_check_branch
          %2828 = sbr.rel (%p2826) target = $region120
        $region119: #{tpu_custom_call.1} parent=115 // pred_region
          %s2829 = sand.u32 %s448, 1
          %s2830 = scalar_lea.sflag [#allocation4], %s2829
          %s2831 = sand.u32 %s448, 1
          %s2832 = smul.addr %s2831, 8
          %s2833 = scalar_lea.vmem [#allocation10], %s2832
          %2834 = dma.done %s2830, 128
        $region120: #{tpu_custom_call.1} parent=115 // pred_fallthru
          _
      $region116: #{tpu_custom_call.1} parent=5 // pred_fallthru
        _
    $region6: #{tpu_custom_call.1} parent=1 // loop_footer
      %s34 = sadd.s32 1, %s30
    $region7: #{tpu_custom_call.1} parent=1 // loop_footer_branch
      %29 = sbr.rel target = $region3
    $region8: #{tpu_custom_call.1} parent=1 // loop_exit
      _
    %2835 = vsyncpa [#allocation3], 1
    %s2836 = scalar_lea.sflag [#allocation3], 1
    %2837 = vsyncpa %s2836, 1
    %2838 = vsyncpa [#allocation6], 1
    %2839 = vsyncpa [#allocation9], 1
    %2840 = vsyncpa [#allocation4], 1
    %s2841 = scalar_lea.sflag [#allocation4], 1
    %2842 = vsyncpa %s2841, 1

</llo_original>
